<compile_context>
chip_gen: v7x
topology: tpu7x:2x2x1
jax: 0.10.0
libtpu: 0.0.40
codegen_flags: <defaults>
</compile_context>

<pallas_src>
import math

import numpy as np
import jax
import jax.numpy as jnp
from jax import lax
from jax.experimental import pallas as pl
from jax.experimental.pallas import tpu as pltpu

FEATURE_DIM = 82
HIDDEN_DIM = 192
NUM_HEADS = 4
HEAD_DIM = HIDDEN_DIM // NUM_HEADS
LN_EPS = 1e-5
MAX_BLOCK_B = 1024         # per-step batch tile cap (footprint ~15 MiB at 1024)


def _round_up(n, m):
  return ((n + m - 1) // m) * m


def _attention_model_kernel(
    x_ref,                            # (bB, 2, 82) f32 native-layout input tile
    we_ref, be_ref, g_ref, beta_ref,  # encoder Linear (bf16 W) + LayerNorm (f32)
    waw_ref, wbw_ref, b1w_ref,        # winner head layer-1 with Wvo folded in
    wad_ref, wbd_ref, b1d_ref,        # odds   head layer-1 with Wvo folded in
    w2_ref, b2_ref,                   # (2, H) f32 head-2 rows (block-diag), (1, 2)
    out_ref):                         # (bB, 2) f32
  xv = x_ref[...]                     # (bB, 2, F) f32
  t1 = xv[:, 0, :].astype(jnp.bfloat16)
  t2 = xv[:, 1, :].astype(jnp.bfloat16)

  def encode(t):
    # Linear (bf16 MXU, f32 accum) -> LayerNorm -> ReLU
    h = jnp.dot(t, we_ref[...], preferred_element_type=jnp.float32) + be_ref[...]
    inv_h = 1.0 / HIDDEN_DIM
    mu = jnp.sum(h, axis=-1, keepdims=True) * inv_h
    var = jnp.sum(h * h, axis=-1, keepdims=True) * inv_h - mu * mu
    hn = (h - mu) * lax.rsqrt(jnp.maximum(var, 0.0) + LN_EPS)
    enc = jnp.maximum(hn * g_ref[...] + beta_ref[...], 0.0)
    return enc.astype(jnp.bfloat16)

  enc1 = encode(t1)                   # (bB, H) bf16
  enc2 = encode(t2)

  # Cross attention with a single key position => softmax == 1, attention == V.
  # V and output projections were folded into the head-1 weights on the host,
  # so each head is just: relu(enc2 @ Wa + enc1 @ Wb + b1') dotted with w2 row.
  def head(wa_ref, wb_ref, b1_ref, w2_row):
    h = (jnp.dot(enc2, wa_ref[...], preferred_element_type=jnp.float32)
         + jnp.dot(enc1, wb_ref[...], preferred_element_type=jnp.float32)
         + b1_ref[...])
    h = jnp.maximum(h, 0.0)
    # TODO(synk): Dropout(0.2) is identity at inference (eval mode).
    # Block-diagonal N=2 projection done on the VPU/XLU instead of the MXU.
    return jnp.sum(h * w2_row, axis=-1, keepdims=True)

  logit_w = head(waw_ref, wbw_ref, b1w_ref, w2_ref[0:1, :])
  logit_d = head(wad_ref, wbd_ref, b1d_ref, w2_ref[1:2, :])
  logits = jnp.concatenate([logit_w, logit_d], axis=1) + b2_ref[...]
  out_ref[...] = jax.nn.sigmoid(logits)


@jax.jit
def attention_model(x, packed):
  B = x.shape[0]
  x = x.astype(jnp.float32)

  # Tile choice: no batch padding (Pallas masks the ragged last block); >=2 grid
  # steps when B >= 16 so both v7x TensorCores get work; up to 1024 rows/step.
  b_eff = max(B, 8)
  n_tiles = max(-(-b_eff // MAX_BLOCK_B), 2 if b_eff >= 16 else 1)
  block_B = _round_up(-(-b_eff // n_tiles), 8)
  grid = (pl.cdiv(B, block_B),)

  def const_spec(a):
    return pl.BlockSpec(a.shape, lambda i, n=a.ndim: (0,) * n)   # VMEM-resident

  in_specs = ([pl.BlockSpec((block_B, 2, FEATURE_DIM), lambda i: (i, 0, 0))]
              + [const_spec(p) for p in packed])
  out_spec = pl.BlockSpec((block_B, 2), lambda i: (i, 0))

  return pl.pallas_call(
      _attention_model_kernel,
      out_shape=jax.ShapeDtypeStruct((B, 2), jnp.float32),
      grid=grid,
      in_specs=in_specs,
      out_specs=out_spec,
      compiler_params=pltpu.CompilerParams(
          dimension_semantics=("parallel",),
          vmem_limit_bytes=40 * 1024 * 1024),
  )(x, *packed)


def init_params(key):
  """Parameters in the original (unfused) PyTorch-like layout, (in, out)."""
  ks = jax.random.split(key, 9)

  def lin(k, din, dout):
    bound = 1.0 / math.sqrt(din)
    kw, kb = jax.random.split(k)
    w = jax.random.uniform(kw, (din, dout), jnp.float32, -bound, bound)
    b = jax.random.uniform(kb, (1, dout), jnp.float32, -bound, bound)
    return w, b

  we, be = lin(ks[0], FEATURE_DIM, HIDDEN_DIM)
  gamma = jnp.ones((1, HIDDEN_DIM), jnp.float32)     # LayerNorm defaults
  beta = jnp.zeros((1, HIDDEN_DIM), jnp.float32)
  wq, bq = lin(ks[1], HIDDEN_DIM, HIDDEN_DIM)
  wk, bk = lin(ks[2], HIDDEN_DIM, HIDDEN_DIM)
  wv, bv = lin(ks[3], HIDDEN_DIM, HIDDEN_DIM)
  wo, bo = lin(ks[4], HIDDEN_DIM, HIDDEN_DIM)
  ww1, bw1 = lin(ks[5], 2 * HIDDEN_DIM, HIDDEN_DIM)
  ww2, bw2 = lin(ks[6], HIDDEN_DIM, 1)
  wd1, bd1 = lin(ks[7], 2 * HIDDEN_DIM, HIDDEN_DIM)
  wd2, bd2 = lin(ks[8], HIDDEN_DIM, 1)
  return (we, be, gamma, beta, wq, bq, wk, bk, wv, bv, wo, bo,
          ww1, bw1, ww2, bw2, wd1, bd1, wd2, bd2)


def pack_params(params):
  """Host-side one-time folding (float64) -> bf16 matmul weights / f32 rest."""
  (we, be, gamma, beta, wq, bq, wk, bk, wv, bv, wo, bo,
   ww1, bw1, ww2, bw2, wd1, bd1, wd2, bd2) = [
      np.asarray(p, np.float64) for p in params]
  del wq, bq, wk, bk   # provably dead: softmax over a single key is exactly 1

  H = HIDDEN_DIM
  w_vo = wv @ wo                       # folded V*O projection of the MHA
  b_vo = bv @ wo + bo

  def fold_head(w1, b1):
    # combined = [enc2 @ w_vo + b_vo, enc1 @ w_vo + b_vo]  (concat along features)
    wa = w_vo @ w1[:H, :]              # multiplies enc2
    wb = w_vo @ w1[H:, :]              # multiplies enc1
    b1f = b_vo @ (w1[:H, :] + w1[H:, :]) + b1
    return wa, wb, b1f

  wa_w, wb_w, b1w = fold_head(ww1, bw1)
  wa_d, wb_d, b1d = fold_head(wd1, bd1)
  w2rows = np.stack([ww2[:, 0], wd2[:, 0]], axis=0)    # (2, H) block-diag rows
  b2 = np.concatenate([bw2, bd2], axis=1)               # (1, 2)

  bf16 = lambda a: jnp.asarray(a, jnp.bfloat16)
  f32 = lambda a: jnp.asarray(a, jnp.float32)
  return (bf16(we), f32(be), f32(gamma), f32(beta),
          bf16(wa_w), bf16(wb_w), f32(b1w),
          bf16(wa_d), bf16(wb_d), f32(b1d),
          f32(w2rows), f32(b2))


def reference(x, params):
  """Pure-JAX f32 reference mirroring the PyTorch forward (eval mode), unfused."""
  (we, be, gamma, beta, wq, bq, wk, bk, wv, bv, wo, bo,
   ww1, bw1, ww2, bw2, wd1, bd1, wd2, bd2) = params

  def enc(t):
    h = t @ we + be
    mu = h.mean(-1, keepdims=True)
    var = ((h - mu) ** 2).mean(-1, keepdims=True)
    return jnp.maximum((h - mu) / jnp.sqrt(var + LN_EPS) * gamma + beta, 0.0)

  t1 = enc(x[:, 0])
  t2 = enc(x[:, 1])

  def attend(q_in, kv_in):
    B = q_in.shape[0]
    q = (q_in @ wq + bq).reshape(B, NUM_HEADS, HEAD_DIM)
    k = (kv_in @ wk + bk).reshape(B, NUM_HEADS, HEAD_DIM)
    v = (kv_in @ wv + bv).reshape(B, NUM_HEADS, HEAD_DIM)
    s = jnp.sum(q * k, axis=-1, keepdims=True) / math.sqrt(HEAD_DIM)
    w = jax.nn.softmax(s, axis=-1)        # single key position -> exactly 1
    attn = (w * v).reshape(B, HIDDEN_DIM)
    return attn @ wo + bo

  a12 = attend(t1, t2)
  a21 = attend(t2, t1)
  comb = jnp.concatenate([a12, a21], axis=1)

  def head(w1, b1, w2, b2):
    h = jnp.maximum(comb @ w1 + b1, 0.0)
    return jax.nn.sigmoid(h @ w2 + b2)

  return jnp.concatenate([head(ww1, bw1, ww2, bw2),
                          head(wd1, bd1, wd2, bd2)], axis=1)


if __name__ == "__main__":
  key = jax.random.PRNGKey(0)
  kx, kp = jax.random.split(key)
  B = 8
  x = jax.random.normal(kx, (B, 2, FEATURE_DIM), dtype=jnp.float32)
  params = init_params(kp)
  packed = pack_params(params)

  out = attention_model(x, packed)
  out = jax.block_until_ready(out)
  ref = reference(x, params)

  assert out.shape == (B, 2), out.shape
  # bf16 MXU matmuls (f32 accumulation): tolerance relaxed vs full-f32 path.
  assert jnp.allclose(out, ref, atol=2e-2, rtol=2e-2), (out, ref)
  print("KERNEL_OK")
</pallas_src>

<mosaic_0001>
module attributes {stable_mosaic.version = 11 : i64} {
  func.func @_attention_model_kernel(%arg0: i32, %arg1: memref<8x2x82xf32, #tpu.memory_space<vmem>>, %arg2: memref<82x192xbf16, #tpu.memory_space<vmem>>, %arg3: memref<1x192xf32, #tpu.memory_space<vmem>>, %arg4: memref<1x192xf32, #tpu.memory_space<vmem>>, %arg5: memref<1x192xf32, #tpu.memory_space<vmem>>, %arg6: memref<192x192xbf16, #tpu.memory_space<vmem>>, %arg7: memref<192x192xbf16, #tpu.memory_space<vmem>>, %arg8: memref<1x192xf32, #tpu.memory_space<vmem>>, %arg9: memref<192x192xbf16, #tpu.memory_space<vmem>>, %arg10: memref<192x192xbf16, #tpu.memory_space<vmem>>, %arg11: memref<1x192xf32, #tpu.memory_space<vmem>>, %arg12: memref<2x192xf32, #tpu.memory_space<vmem>>, %arg13: memref<1x2xf32, #tpu.memory_space<vmem>>, %arg14: memref<8x2xf32, #tpu.memory_space<vmem>>) attributes {dimension_semantics = [#tpu.dimension_semantics<parallel>], iteration_bounds = array<i64: 1>, scalar_prefetch = 0 : i64, scratch_operands = 0 : i64, tpu.core_type = #tpu.core_type<tc>, window_params = [{transform_indices = @transform_0, window_bounds = array<i64: 8, 2, 82>}, {pipeline_mode = #tpu.pipeline_mode<synchronous>, transform_indices = @transform_1, window_bounds = array<i64: 82, 192>}, {pipeline_mode = #tpu.pipeline_mode<synchronous>, transform_indices = @transform_2, window_bounds = array<i64: 1, 192>}, {pipeline_mode = #tpu.pipeline_mode<synchronous>, transform_indices = @transform_3, window_bounds = array<i64: 1, 192>}, {pipeline_mode = #tpu.pipeline_mode<synchronous>, transform_indices = @transform_4, window_bounds = array<i64: 1, 192>}, {pipeline_mode = #tpu.pipeline_mode<synchronous>, transform_indices = @transform_5, window_bounds = array<i64: 192, 192>}, {pipeline_mode = #tpu.pipeline_mode<synchronous>, transform_indices = @transform_6, window_bounds = array<i64: 192, 192>}, {pipeline_mode = #tpu.pipeline_mode<synchronous>, transform_indices = @transform_7, window_bounds = array<i64: 1, 192>}, {pipeline_mode = #tpu.pipeline_mode<synchronous>, transform_indices = @transform_8, window_bounds = array<i64: 192, 192>}, {pipeline_mode = #tpu.pipeline_mode<synchronous>, transform_indices = @transform_9, window_bounds = array<i64: 192, 192>}, {pipeline_mode = #tpu.pipeline_mode<synchronous>, transform_indices = @transform_10, window_bounds = array<i64: 1, 192>}, {pipeline_mode = #tpu.pipeline_mode<synchronous>, transform_indices = @transform_11, window_bounds = array<i64: 2, 192>}, {pipeline_mode = #tpu.pipeline_mode<synchronous>, transform_indices = @transform_12, window_bounds = array<i64: 1, 2>}, {transform_indices = @transform_13, window_bounds = array<i64: 8, 2>}]} {
    %c0 = arith.constant 0 : index
    %c0_0 = arith.constant 0 : index
    %c0_1 = arith.constant 0 : index
    %0 = vector.load %arg1[%c0, %c0_0, %c0_1] : memref<8x2x82xf32, #tpu.memory_space<vmem>>, vector<8x2x82xf32>
    %1 = vector.extract_strided_slice %0 {offsets = [0, 0, 0], sizes = [8, 1, 82], strides = [1, 1, 1]} : vector<8x2x82xf32> to vector<8x1x82xf32>
    %2 = vector.shape_cast %1 : vector<8x1x82xf32> to vector<8x82xf32>
    %3 = arith.truncf %2 : vector<8x82xf32> to vector<8x82xbf16>
    %4 = vector.extract_strided_slice %0 {offsets = [0, 1, 0], sizes = [8, 1, 82], strides = [1, 1, 1]} : vector<8x2x82xf32> to vector<8x1x82xf32>
    %5 = vector.shape_cast %4 : vector<8x1x82xf32> to vector<8x82xf32>
    %6 = arith.truncf %5 : vector<8x82xf32> to vector<8x82xbf16>
    %c0_2 = arith.constant 0 : index
    %c0_3 = arith.constant 0 : index
    %7 = vector.load %arg2[%c0_2, %c0_3] : memref<82x192xbf16, #tpu.memory_space<vmem>>, vector<82x192xbf16>
    %cst = arith.constant dense<0.000000e+00> : vector<8x192xf32>
    %8 = tpu.matmul %3, %7, %cst {dimension_numbers = #tpu.dot_dimension_numbers<[1], [0], [0], [1], [0, 0, 1, 1], [], []>} : vector<8x82xbf16>, vector<82x192xbf16>, vector<8x192xf32> -> vector<8x192xf32>
    %c0_4 = arith.constant 0 : index
    %c0_5 = arith.constant 0 : index
    %9 = vector.load %arg3[%c0_4, %c0_5] : memref<1x192xf32, #tpu.memory_space<vmem>>, vector<1x192xf32>
    %10 = vector.broadcast %9 : vector<1x192xf32> to vector<8x192xf32>
    %11 = arith.addf %8, %10 : vector<8x192xf32>
    %cst_6 = arith.constant dense<0.000000e+00> : vector<8xf32>
    %12 = vector.multi_reduction <add>, %11, %cst_6 [1] : vector<8x192xf32> to vector<8xf32>
    %13 = vector.shape_cast %12 : vector<8xf32> to vector<8x1xf32>
    %cst_7 = arith.constant 0.00520833349 : f32
    %14 = vector.broadcast %cst_7 : f32 to vector<8x1xf32>
    %15 = arith.mulf %13, %14 : vector<8x1xf32>
    %16 = arith.mulf %11, %11 : vector<8x192xf32>
    %cst_8 = arith.constant dense<0.000000e+00> : vector<8xf32>
    %17 = vector.multi_reduction <add>, %16, %cst_8 [1] : vector<8x192xf32> to vector<8xf32>
    %18 = vector.shape_cast %17 : vector<8xf32> to vector<8x1xf32>
    %cst_9 = arith.constant 0.00520833349 : f32
    %19 = vector.broadcast %cst_9 : f32 to vector<8x1xf32>
    %20 = arith.mulf %18, %19 : vector<8x1xf32>
    %21 = arith.mulf %15, %15 : vector<8x1xf32>
    %22 = arith.subf %20, %21 : vector<8x1xf32>
    %23 = vector.broadcast %15 : vector<8x1xf32> to vector<8x192xf32>
    %24 = arith.subf %11, %23 : vector<8x192xf32>
    %cst_10 = arith.constant 0.000000e+00 : f32
    %25 = vector.broadcast %cst_10 : f32 to vector<8x1xf32>
    %26 = arith.maximumf %22, %25 : vector<8x1xf32>
    %cst_11 = arith.constant 9.99999974E-6 : f32
    %27 = vector.broadcast %cst_11 : f32 to vector<8x1xf32>
    %28 = arith.addf %26, %27 : vector<8x1xf32>
    %29 = math.rsqrt %28 : vector<8x1xf32>
    %30 = vector.broadcast %29 : vector<8x1xf32> to vector<8x192xf32>
    %31 = arith.mulf %24, %30 : vector<8x192xf32>
    %c0_12 = arith.constant 0 : index
    %c0_13 = arith.constant 0 : index
    %32 = vector.load %arg4[%c0_12, %c0_13] : memref<1x192xf32, #tpu.memory_space<vmem>>, vector<1x192xf32>
    %33 = vector.broadcast %32 : vector<1x192xf32> to vector<8x192xf32>
    %34 = arith.mulf %31, %33 : vector<8x192xf32>
    %c0_14 = arith.constant 0 : index
    %c0_15 = arith.constant 0 : index
    %35 = vector.load %arg5[%c0_14, %c0_15] : memref<1x192xf32, #tpu.memory_space<vmem>>, vector<1x192xf32>
    %36 = vector.broadcast %35 : vector<1x192xf32> to vector<8x192xf32>
    %37 = arith.addf %34, %36 : vector<8x192xf32>
    %cst_16 = arith.constant 0.000000e+00 : f32
    %38 = vector.broadcast %cst_16 : f32 to vector<8x192xf32>
    %39 = arith.maximumf %37, %38 : vector<8x192xf32>
    %40 = arith.truncf %39 : vector<8x192xf32> to vector<8x192xbf16>
    %c0_17 = arith.constant 0 : index
    %c0_18 = arith.constant 0 : index
    %41 = vector.load %arg2[%c0_17, %c0_18] : memref<82x192xbf16, #tpu.memory_space<vmem>>, vector<82x192xbf16>
    %cst_19 = arith.constant dense<0.000000e+00> : vector<8x192xf32>
    %42 = tpu.matmul %6, %41, %cst_19 {dimension_numbers = #tpu.dot_dimension_numbers<[1], [0], [0], [1], [0, 0, 1, 1], [], []>} : vector<8x82xbf16>, vector<82x192xbf16>, vector<8x192xf32> -> vector<8x192xf32>
    %c0_20 = arith.constant 0 : index
    %c0_21 = arith.constant 0 : index
    %43 = vector.load %arg3[%c0_20, %c0_21] : memref<1x192xf32, #tpu.memory_space<vmem>>, vector<1x192xf32>
    %44 = vector.broadcast %43 : vector<1x192xf32> to vector<8x192xf32>
    %45 = arith.addf %42, %44 : vector<8x192xf32>
    %cst_22 = arith.constant dense<0.000000e+00> : vector<8xf32>
    %46 = vector.multi_reduction <add>, %45, %cst_22 [1] : vector<8x192xf32> to vector<8xf32>
    %47 = vector.shape_cast %46 : vector<8xf32> to vector<8x1xf32>
    %cst_23 = arith.constant 0.00520833349 : f32
    %48 = vector.broadcast %cst_23 : f32 to vector<8x1xf32>
    %49 = arith.mulf %47, %48 : vector<8x1xf32>
    %50 = arith.mulf %45, %45 : vector<8x192xf32>
    %cst_24 = arith.constant dense<0.000000e+00> : vector<8xf32>
    %51 = vector.multi_reduction <add>, %50, %cst_24 [1] : vector<8x192xf32> to vector<8xf32>
    %52 = vector.shape_cast %51 : vector<8xf32> to vector<8x1xf32>
    %cst_25 = arith.constant 0.00520833349 : f32
    %53 = vector.broadcast %cst_25 : f32 to vector<8x1xf32>
    %54 = arith.mulf %52, %53 : vector<8x1xf32>
    %55 = arith.mulf %49, %49 : vector<8x1xf32>
    %56 = arith.subf %54, %55 : vector<8x1xf32>
    %57 = vector.broadcast %49 : vector<8x1xf32> to vector<8x192xf32>
    %58 = arith.subf %45, %57 : vector<8x192xf32>
    %cst_26 = arith.constant 0.000000e+00 : f32
    %59 = vector.broadcast %cst_26 : f32 to vector<8x1xf32>
    %60 = arith.maximumf %56, %59 : vector<8x1xf32>
    %cst_27 = arith.constant 9.99999974E-6 : f32
    %61 = vector.broadcast %cst_27 : f32 to vector<8x1xf32>
    %62 = arith.addf %60, %61 : vector<8x1xf32>
    %63 = math.rsqrt %62 : vector<8x1xf32>
    %64 = vector.broadcast %63 : vector<8x1xf32> to vector<8x192xf32>
    %65 = arith.mulf %58, %64 : vector<8x192xf32>
    %c0_28 = arith.constant 0 : index
    %c0_29 = arith.constant 0 : index
    %66 = vector.load %arg4[%c0_28, %c0_29] : memref<1x192xf32, #tpu.memory_space<vmem>>, vector<1x192xf32>
    %67 = vector.broadcast %66 : vector<1x192xf32> to vector<8x192xf32>
    %68 = arith.mulf %65, %67 : vector<8x192xf32>
    %c0_30 = arith.constant 0 : index
    %c0_31 = arith.constant 0 : index
    %69 = vector.load %arg5[%c0_30, %c0_31] : memref<1x192xf32, #tpu.memory_space<vmem>>, vector<1x192xf32>
    %70 = vector.broadcast %69 : vector<1x192xf32> to vector<8x192xf32>
    %71 = arith.addf %68, %70 : vector<8x192xf32>
    %cst_32 = arith.constant 0.000000e+00 : f32
    %72 = vector.broadcast %cst_32 : f32 to vector<8x192xf32>
    %73 = arith.maximumf %71, %72 : vector<8x192xf32>
    %74 = arith.truncf %73 : vector<8x192xf32> to vector<8x192xbf16>
    %c0_33 = arith.constant 0 : index
    %c0_34 = arith.constant 0 : index
    %75 = vector.load %arg12[%c0_33, %c0_34] : memref<2x192xf32, #tpu.memory_space<vmem>>, vector<1x192xf32>
    %c0_35 = arith.constant 0 : index
    %c0_36 = arith.constant 0 : index
    %76 = vector.load %arg6[%c0_35, %c0_36] : memref<192x192xbf16, #tpu.memory_space<vmem>>, vector<192x192xbf16>
    %cst_37 = arith.constant dense<0.000000e+00> : vector<8x192xf32>
    %77 = tpu.matmul %74, %76, %cst_37 {dimension_numbers = #tpu.dot_dimension_numbers<[1], [0], [0], [1], [0, 0, 1, 1], [], []>} : vector<8x192xbf16>, vector<192x192xbf16>, vector<8x192xf32> -> vector<8x192xf32>
    %c0_38 = arith.constant 0 : index
    %c0_39 = arith.constant 0 : index
    %78 = vector.load %arg7[%c0_38, %c0_39] : memref<192x192xbf16, #tpu.memory_space<vmem>>, vector<192x192xbf16>
    %cst_40 = arith.constant dense<0.000000e+00> : vector<8x192xf32>
    %79 = tpu.matmul %40, %78, %cst_40 {dimension_numbers = #tpu.dot_dimension_numbers<[1], [0], [0], [1], [0, 0, 1, 1], [], []>} : vector<8x192xbf16>, vector<192x192xbf16>, vector<8x192xf32> -> vector<8x192xf32>
    %80 = arith.addf %77, %79 : vector<8x192xf32>
    %c0_41 = arith.constant 0 : index
    %c0_42 = arith.constant 0 : index
    %81 = vector.load %arg8[%c0_41, %c0_42] : memref<1x192xf32, #tpu.memory_space<vmem>>, vector<1x192xf32>
    %82 = vector.broadcast %81 : vector<1x192xf32> to vector<8x192xf32>
    %83 = arith.addf %80, %82 : vector<8x192xf32>
    %cst_43 = arith.constant 0.000000e+00 : f32
    %84 = vector.broadcast %cst_43 : f32 to vector<8x192xf32>
    %85 = arith.maximumf %83, %84 : vector<8x192xf32>
    %86 = vector.broadcast %75 : vector<1x192xf32> to vector<8x192xf32>
    %87 = arith.mulf %85, %86 : vector<8x192xf32>
    %cst_44 = arith.constant dense<0.000000e+00> : vector<8xf32>
    %88 = vector.multi_reduction <add>, %87, %cst_44 [1] : vector<8x192xf32> to vector<8xf32>
    %89 = vector.shape_cast %88 : vector<8xf32> to vector<8x1xf32>
    %c1 = arith.constant 1 : index
    %c0_45 = arith.constant 0 : index
    %90 = vector.load %arg12[%c1, %c0_45] : memref<2x192xf32, #tpu.memory_space<vmem>>, vector<1x192xf32>
    %c0_46 = arith.constant 0 : index
    %c0_47 = arith.constant 0 : index
    %91 = vector.load %arg9[%c0_46, %c0_47] : memref<192x192xbf16, #tpu.memory_space<vmem>>, vector<192x192xbf16>
    %cst_48 = arith.constant dense<0.000000e+00> : vector<8x192xf32>
    %92 = tpu.matmul %74, %91, %cst_48 {dimension_numbers = #tpu.dot_dimension_numbers<[1], [0], [0], [1], [0, 0, 1, 1], [], []>} : vector<8x192xbf16>, vector<192x192xbf16>, vector<8x192xf32> -> vector<8x192xf32>
    %c0_49 = arith.constant 0 : index
    %c0_50 = arith.constant 0 : index
    %93 = vector.load %arg10[%c0_49, %c0_50] : memref<192x192xbf16, #tpu.memory_space<vmem>>, vector<192x192xbf16>
    %cst_51 = arith.constant dense<0.000000e+00> : vector<8x192xf32>
    %94 = tpu.matmul %40, %93, %cst_51 {dimension_numbers = #tpu.dot_dimension_numbers<[1], [0], [0], [1], [0, 0, 1, 1], [], []>} : vector<8x192xbf16>, vector<192x192xbf16>, vector<8x192xf32> -> vector<8x192xf32>
    %95 = arith.addf %92, %94 : vector<8x192xf32>
    %c0_52 = arith.constant 0 : index
    %c0_53 = arith.constant 0 : index
    %96 = vector.load %arg11[%c0_52, %c0_53] : memref<1x192xf32, #tpu.memory_space<vmem>>, vector<1x192xf32>
    %97 = vector.broadcast %96 : vector<1x192xf32> to vector<8x192xf32>
    %98 = arith.addf %95, %97 : vector<8x192xf32>
    %cst_54 = arith.constant 0.000000e+00 : f32
    %99 = vector.broadcast %cst_54 : f32 to vector<8x192xf32>
    %100 = arith.maximumf %98, %99 : vector<8x192xf32>
    %101 = vector.broadcast %90 : vector<1x192xf32> to vector<8x192xf32>
    %102 = arith.mulf %100, %101 : vector<8x192xf32>
    %cst_55 = arith.constant dense<0.000000e+00> : vector<8xf32>
    %103 = vector.multi_reduction <add>, %102, %cst_55 [1] : vector<8x192xf32> to vector<8xf32>
    %104 = vector.shape_cast %103 : vector<8xf32> to vector<8x1xf32>
    %105 = tpu.concatenate %89, %104 in 1 : vector<8x1xf32>, vector<8x1xf32> -> vector<8x2xf32>
    %c0_56 = arith.constant 0 : index
    %c0_57 = arith.constant 0 : index
    %106 = vector.load %arg13[%c0_56, %c0_57] : memref<1x2xf32, #tpu.memory_space<vmem>>, vector<1x2xf32>
    %107 = vector.broadcast %106 : vector<1x2xf32> to vector<8x2xf32>
    %108 = arith.addf %105, %107 : vector<8x2xf32>
    %109 = arith.negf %108 : vector<8x2xf32>
    %110 = math.exp %109 : vector<8x2xf32>
    %cst_58 = arith.constant 1.000000e+00 : f32
    %111 = vector.broadcast %cst_58 : f32 to vector<8x2xf32>
    %112 = arith.addf %111, %110 : vector<8x2xf32>
    %113 = arith.divf %111, %112 : vector<8x2xf32>
    %c0_59 = arith.constant 0 : index
    %c0_60 = arith.constant 0 : index
    %114 = vector.load %arg14[%c0_59, %c0_60] : memref<8x2xf32, #tpu.memory_space<vmem>>, vector<8x2xf32>
    tpu.vector_store %arg14[%c0_59, %c0_60], %113 {strides = array<i32>} : memref<8x2xf32, #tpu.memory_space<vmem>>, vector<8x2xf32>,
    return
  }
  func.func @transform_0(%arg0: i32) -> (i32, i32, i32) {
    %c0_i32 = arith.constant 0 : i32
    %c0_i32_0 = arith.constant 0 : i32
    %c0_i32_1 = arith.constant 0 : i32
    return %arg0, %c0_i32, %c0_i32_0 : i32, i32, i32
  }
  func.func @transform_1(%arg0: i32) -> (i32, i32) {
    %c0_i32 = arith.constant 0 : i32
    %c0_i32_0 = arith.constant 0 : i32
    %c0_i32_1 = arith.constant 0 : i32
    return %c0_i32, %c0_i32_0 : i32, i32
  }
  func.func @transform_2(%arg0: i32) -> (i32, i32) {
    %c0_i32 = arith.constant 0 : i32
    %c0_i32_0 = arith.constant 0 : i32
    %c0_i32_1 = arith.constant 0 : i32
    return %c0_i32, %c0_i32_0 : i32, i32
  }
  func.func @transform_3(%arg0: i32) -> (i32, i32) {
    %c0_i32 = arith.constant 0 : i32
    %c0_i32_0 = arith.constant 0 : i32
    %c0_i32_1 = arith.constant 0 : i32
    return %c0_i32, %c0_i32_0 : i32, i32
  }
  func.func @transform_4(%arg0: i32) -> (i32, i32) {
    %c0_i32 = arith.constant 0 : i32
    %c0_i32_0 = arith.constant 0 : i32
    %c0_i32_1 = arith.constant 0 : i32
    return %c0_i32, %c0_i32_0 : i32, i32
  }
  func.func @transform_5(%arg0: i32) -> (i32, i32) {
    %c0_i32 = arith.constant 0 : i32
    %c0_i32_0 = arith.constant 0 : i32
    %c0_i32_1 = arith.constant 0 : i32
    return %c0_i32, %c0_i32_0 : i32, i32
  }
  func.func @transform_6(%arg0: i32) -> (i32, i32) {
    %c0_i32 = arith.constant 0 : i32
    %c0_i32_0 = arith.constant 0 : i32
    %c0_i32_1 = arith.constant 0 : i32
    return %c0_i32, %c0_i32_0 : i32, i32
  }
  func.func @transform_7(%arg0: i32) -> (i32, i32) {
    %c0_i32 = arith.constant 0 : i32
    %c0_i32_0 = arith.constant 0 : i32
    %c0_i32_1 = arith.constant 0 : i32
    return %c0_i32, %c0_i32_0 : i32, i32
  }
  func.func @transform_8(%arg0: i32) -> (i32, i32) {
    %c0_i32 = arith.constant 0 : i32
    %c0_i32_0 = arith.constant 0 : i32
    %c0_i32_1 = arith.constant 0 : i32
    return %c0_i32, %c0_i32_0 : i32, i32
  }
  func.func @transform_9(%arg0: i32) -> (i32, i32) {
    %c0_i32 = arith.constant 0 : i32
    %c0_i32_0 = arith.constant 0 : i32
    %c0_i32_1 = arith.constant 0 : i32
    return %c0_i32, %c0_i32_0 : i32, i32
  }
  func.func @transform_10(%arg0: i32) -> (i32, i32) {
    %c0_i32 = arith.constant 0 : i32
    %c0_i32_0 = arith.constant 0 : i32
    %c0_i32_1 = arith.constant 0 : i32
    return %c0_i32, %c0_i32_0 : i32, i32
  }
  func.func @transform_11(%arg0: i32) -> (i32, i32) {
    %c0_i32 = arith.constant 0 : i32
    %c0_i32_0 = arith.constant 0 : i32
    %c0_i32_1 = arith.constant 0 : i32
    return %c0_i32, %c0_i32_0 : i32, i32
  }
  func.func @transform_12(%arg0: i32) -> (i32, i32) {
    %c0_i32 = arith.constant 0 : i32
    %c0_i32_0 = arith.constant 0 : i32
    %c0_i32_1 = arith.constant 0 : i32
    return %c0_i32, %c0_i32_0 : i32, i32
  }
  func.func @transform_13(%arg0: i32) -> (i32, i32) {
    %c0_i32 = arith.constant 0 : i32
    %c0_i32_0 = arith.constant 0 : i32
    return %arg0, %c0_i32 : i32, i32
  }
}

</mosaic_0001>

<llo_original>
// kernel: attention_model.1
$region0: #{attention_model.1}
  #allocation0 [shape = 'u32[]', space=smem, size = 0x4, offset = 0x4, fixed_abs, tag = 'smem constant byte address 0x4 - core index']
  #allocation1 [shape = 'u32[144,128]{1,0:T(1,128)}', space=vmem, size = 0x12000, scoped, tag = 'internal scratch']
  %s0 = inlined_call_operand.hbm [shape: f32[8,2,82], index: 0, kind: input, shape index: {}]
  %s1 = inlined_call_operand.hbm [shape: bf16[82,192], index: 1, kind: input, shape index: {}]
  %s2 = inlined_call_operand.vmem [shape: f32[1,192], index: 2, kind: input, shape index: {}]
  %s3 = inlined_call_operand.vmem [shape: f32[1,192], index: 3, kind: input, shape index: {}]
  %s4 = inlined_call_operand.vmem [shape: f32[1,192], index: 4, kind: input, shape index: {}]
  %s5 = inlined_call_operand.hbm [shape: bf16[192,192], index: 5, kind: input, shape index: {}]
  %s6 = inlined_call_operand.hbm [shape: bf16[192,192], index: 6, kind: input, shape index: {}]
  %s7 = inlined_call_operand.vmem [shape: f32[1,192], index: 7, kind: input, shape index: {}]
  %s8 = inlined_call_operand.hbm [shape: bf16[192,192], index: 8, kind: input, shape index: {}]
  %s9 = inlined_call_operand.hbm [shape: bf16[192,192], index: 9, kind: input, shape index: {}]
  %s10 = inlined_call_operand.vmem [shape: f32[1,192], index: 10, kind: input, shape index: {}]
  %s11 = inlined_call_operand.vmem [shape: f32[2,192], index: 11, kind: input, shape index: {}]
  %s12 = inlined_call_operand.vmem [shape: f32[1,2], index: 12, kind: input, shape index: {}]
  %s13 = inlined_call_operand.vmem [shape: f32[8,2], index: 13, kind: output, shape index: {}]
  %s14 = sld [smem:[#allocation0]]
  $region86: #{attention_model.1} parent=0
    _
  %s16 = ssub.s32 1, %s14
  %s17 = scalar_select 0, %s16, %s14
  $region1: #{attention_model.1} parent=0
    #allocation2 [shape = 'u8[8192]{0}', space=vmem, size = 0x2000, scoped, tag = 'input window, operand 0, single buffered']
    #allocation3 [shape = 's32[1]{0}', space=sflag, size = 0x4, scoped, tag = 'scoped memory for attention_model.1']
    #allocation4 [shape = 'u8[45056]{0}', space=vmem, size = 0xb000, scoped, tag = 'input window, operand 1, single buffered']
    #allocation5 [shape = 's32[1]{0}', space=sflag, size = 0x4, scoped, tag = 'scoped memory for attention_model.1']
    #allocation6 [shape = 'u8[98304]{0}', space=vmem, size = 0x18000, scoped, tag = 'input window, operand 5, single buffered']
    #allocation7 [shape = 'u8[98304]{0}', space=vmem, size = 0x18000, scoped, tag = 'input window, operand 6, single buffered']
    #allocation8 [shape = 's32[1]{0}', space=sflag, size = 0x4, scoped, tag = 'scoped memory for attention_model.1']
    #allocation9 [shape = 'u8[98304]{0}', space=vmem, size = 0x18000, scoped, tag = 'input window, operand 8, single buffered']
    #allocation10 [shape = 'u8[98304]{0}', space=vmem, size = 0x18000, scoped, tag = 'input window, operand 9, single buffered']
    #allocation11 [shape = 's32[1]{0}', space=sflag, size = 0x4, scoped, tag = 'scoped memory for attention_model.1']
    %18 = vsyncpa [#allocation3], 0
    %19 = vsyncpa [#allocation5], 0
    %20 = vsyncpa [#allocation8], 0
    %21 = vsyncpa [#allocation11], 0
    // Predicated region
    $region2: #{attention_model.1} parent=1 // pred_check
      _
    $region3: #{attention_model.1} parent=1 // pred_check_branch
      %23 = sbr.rel (0) target = $region5
    $region4: #{attention_model.1} parent=1 // pred_region
      %s25 = ssub.s32 256, 256
      %26 = vsyncadd [#allocation3], %s25
      %s27 = sshll.u32 [#allocation2], 4
      %s28 = int_to_ptr.vmem [resolvable:$true] %s27
      %33 = dma.hbm_to_vmem [thread:$0]  %s0, 256, %s28, [#allocation3], 32, 32, 2
    $region5: #{attention_model.1} parent=1 // pred_fallthru
      _
    // Predicated region
    $region6: #{attention_model.1} parent=1 // pred_check
      _
    $region7: #{attention_model.1} parent=1 // pred_check_branch
      %35 = sbr.rel (0) target = $region9
    $region8: #{attention_model.1} parent=1 // pred_region
      %s37 = ssub.s32 1408, 1408
      %38 = vsyncadd [#allocation5], %s37
      %s39 = sshll.u32 [#allocation4], 4
      %s40 = int_to_ptr.vmem [resolvable:$true] %s39
      %45 = dma.hbm_to_vmem [thread:$0]  %s1, 1408, %s40, [#allocation5], 128, 128, 8
    $region9: #{attention_model.1} parent=1 // pred_fallthru
      _
    // Predicated region
    $region10: #{attention_model.1} parent=1 // pred_check
      _
    $region11: #{attention_model.1} parent=1 // pred_check_branch
      %47 = sbr.rel (0) target = $region13
    $region12: #{attention_model.1} parent=1 // pred_region
      _
    $region13: #{attention_model.1} parent=1 // pred_fallthru
      _
    // Predicated region
    $region14: #{attention_model.1} parent=1 // pred_check
      _
    $region15: #{attention_model.1} parent=1 // pred_check_branch
      %49 = sbr.rel (0) target = $region17
    $region16: #{attention_model.1} parent=1 // pred_region
      _
    $region17: #{attention_model.1} parent=1 // pred_fallthru
      _
    // Predicated region
    $region18: #{attention_model.1} parent=1 // pred_check
      _
    $region19: #{attention_model.1} parent=1 // pred_check_branch
      %51 = sbr.rel (0) target = $region21
    $region20: #{attention_model.1} parent=1 // pred_region
      _
    $region21: #{attention_model.1} parent=1 // pred_fallthru
      _
    // Predicated region
    $region22: #{attention_model.1} parent=1 // pred_check
      _
    $region23: #{attention_model.1} parent=1 // pred_check_branch
      %53 = sbr.rel (0) target = $region25
    $region24: #{attention_model.1} parent=1 // pred_region
      %s55 = ssub.s32 3072, 3072
      %56 = vsyncadd [#allocation5], %s55
      %s57 = sshll.u32 [#allocation6], 4
      %s58 = int_to_ptr.vmem [resolvable:$true] %s57
      %63 = dma.hbm_to_vmem [thread:$0]  %s5, 3072, %s58, [#allocation5], 128, 128, 8
    $region25: #{attention_model.1} parent=1 // pred_fallthru
      _
    // Predicated region
    $region26: #{attention_model.1} parent=1 // pred_check
      _
    $region27: #{attention_model.1} parent=1 // pred_check_branch
      %65 = sbr.rel (0) target = $region29
    $region28: #{attention_model.1} parent=1 // pred_region
      %s67 = ssub.s32 3072, 3072
      %68 = vsyncadd [#allocation8], %s67
      %s69 = sshll.u32 [#allocation7], 4
      %s70 = int_to_ptr.vmem [resolvable:$true] %s69
      %75 = dma.hbm_to_vmem [thread:$0]  %s6, 3072, %s70, [#allocation8], 128, 128, 8
    $region29: #{attention_model.1} parent=1 // pred_fallthru
      _
    // Predicated region
    $region30: #{attention_model.1} parent=1 // pred_check
      _
    $region31: #{attention_model.1} parent=1 // pred_check_branch
      %77 = sbr.rel (0) target = $region33
    $region32: #{attention_model.1} parent=1 // pred_region
      _
    $region33: #{attention_model.1} parent=1 // pred_fallthru
      _
    // Predicated region
    $region34: #{attention_model.1} parent=1 // pred_check
      _
    $region35: #{attention_model.1} parent=1 // pred_check_branch
      %79 = sbr.rel (0) target = $region37
    $region36: #{attention_model.1} parent=1 // pred_region
      %s81 = ssub.s32 3072, 3072
      %82 = vsyncadd [#allocation8], %s81
      %s83 = sshll.u32 [#allocation9], 4
      %s84 = int_to_ptr.vmem [resolvable:$true] %s83
      %89 = dma.hbm_to_vmem [thread:$0]  %s8, 3072, %s84, [#allocation8], 128, 128, 8
    $region37: #{attention_model.1} parent=1 // pred_fallthru
      _
    // Predicated region
    $region38: #{attention_model.1} parent=1 // pred_check
      _
    $region39: #{attention_model.1} parent=1 // pred_check_branch
      %91 = sbr.rel (0) target = $region41
    $region40: #{attention_model.1} parent=1 // pred_region
      %s93 = ssub.s32 3072, 3072
      %94 = vsyncadd [#allocation11], %s93
      %s95 = sshll.u32 [#allocation10], 4
      %s96 = int_to_ptr.vmem [resolvable:$true] %s95
      %101 = dma.hbm_to_vmem [thread:$0]  %s9, 3072, %s96, [#allocation11], 128, 128, 8
    $region41: #{attention_model.1} parent=1 // pred_fallthru
      _
    // Predicated region
    $region42: #{attention_model.1} parent=1 // pred_check
      _
    $region43: #{attention_model.1} parent=1 // pred_check_branch
      %103 = sbr.rel (0) target = $region45
    $region44: #{attention_model.1} parent=1 // pred_region
      _
    $region45: #{attention_model.1} parent=1 // pred_fallthru
      _
    // Predicated region
    $region46: #{attention_model.1} parent=1 // pred_check
      _
    $region47: #{attention_model.1} parent=1 // pred_check_branch
      %105 = sbr.rel (0) target = $region49
    $region48: #{attention_model.1} parent=1 // pred_region
      _
    $region49: #{attention_model.1} parent=1 // pred_fallthru
      _
    // Predicated region
    $region50: #{attention_model.1} parent=1 // pred_check
      _
    $region51: #{attention_model.1} parent=1 // pred_check_branch
      %107 = sbr.rel (0) target = $region53
    $region52: #{attention_model.1} parent=1 // pred_region
      _
    $region53: #{attention_model.1} parent=1 // pred_fallthru
      _
    // Predicated region
    $region54: #{attention_model.1} parent=1 // pred_check
      _
    $region55: #{attention_model.1} parent=1 // pred_check_branch
      %109 = sbr.rel (0) target = $region57
    $region56: #{attention_model.1} parent=1 // pred_region
      %110 = dma.done [#allocation3], 256
    $region57: #{attention_model.1} parent=1 // pred_fallthru
      _
    // Predicated region
    $region58: #{attention_model.1} parent=1 // pred_check
      _
    $region59: #{attention_model.1} parent=1 // pred_check_branch
      %112 = sbr.rel (0) target = $region61
    $region60: #{attention_model.1} parent=1 // pred_region
      %113 = dma.done [#allocation5], 1408
    $region61: #{attention_model.1} parent=1 // pred_fallthru
      _
    // Predicated region
    $region62: #{attention_model.1} parent=1 // pred_check
      _
    $region63: #{attention_model.1} parent=1 // pred_check_branch
      %115 = sbr.rel (0) target = $region65
    $region64: #{attention_model.1} parent=1 // pred_region
      %116 = dma.done [#allocation5], 3072
    $region65: #{attention_model.1} parent=1 // pred_fallthru
      _
    // Predicated region
    $region66: #{attention_model.1} parent=1 // pred_check
      _
    $region67: #{attention_model.1} parent=1 // pred_check_branch
      %118 = sbr.rel (0) target = $region69
    $region68: #{attention_model.1} parent=1 // pred_region
      %119 = dma.done [#allocation8], 3072
    $region69: #{attention_model.1} parent=1 // pred_fallthru
      _
    // Predicated region
    $region70: #{attention_model.1} parent=1 // pred_check
      _
    $region71: #{attention_model.1} parent=1 // pred_check_branch
      %121 = sbr.rel (0) target = $region73
    $region72: #{attention_model.1} parent=1 // pred_region
      %122 = dma.done [#allocation8], 3072
    $region73: #{attention_model.1} parent=1 // pred_fallthru
      _
    // Predicated region
    $region74: #{attention_model.1} parent=1 // pred_check
      _
    $region75: #{attention_model.1} parent=1 // pred_check_branch
      %124 = sbr.rel (0) target = $region77
    $region76: #{attention_model.1} parent=1 // pred_region
      %125 = dma.done [#allocation11], 3072
    $region77: #{attention_model.1} parent=1 // pred_fallthru
      _
    %v127 = vld [vmem:[#allocation2] sm:$0x3]
    %v128 = vld [vmem:[#allocation2 + $0x2] sm:$0x3]
    %v129 = vld [vmem:[#allocation2 + $0x4] sm:$0x3]
    %v130 = vld [vmem:[#allocation2 + $0x6] sm:$0x3]
    %v131 = vld [vmem:[#allocation2 + $0x8] sm:$0x3]
    %v132 = vld [vmem:[#allocation2 + $0xa] sm:$0x3]
    %v133 = vld [vmem:[#allocation2 + $0xc] sm:$0x3]
    %v134 = vld [vmem:[#allocation2 + $0xe] sm:$0x3]
    %v135 = vpack.c.bf16 %v127, %v127
    %v136 = vpack.c.bf16 %v128, %v128
    %v137 = vpack.c.bf16 %v129, %v129
    %v138 = vpack.c.bf16 %v130, %v130
    %v139 = vpack.c.bf16 %v131, %v131
    %v140 = vpack.c.bf16 %v132, %v132
    %v141 = vpack.c.bf16 %v133, %v133
    %v142 = vpack.c.bf16 %v134, %v134
    %v143 = vld [vmem:[#allocation4] sm:$0xff]
    %v144 = vld [vmem:[#allocation4 + $0x8] sm:$0xff]
    %v145 = vld [vmem:[#allocation4 + $0x10] sm:$0xff]
    %v146 = vld [vmem:[#allocation4 + $0x18] sm:$0xff]
    %v147 = vld [vmem:[#allocation4 + $0x20] sm:$0xff]
    %v148 = vld [vmem:[#allocation4 + $0x28] sm:$0xff]
    %v149 = vld [vmem:[#allocation4 + $0x30] sm:$0xff]
    %v150 = vld [vmem:[#allocation4 + $0x38] sm:$0xff]
    %v151 = vld [vmem:[#allocation4 + $0x40] sm:$0xff]
    %v152 = vld [vmem:[#allocation4 + $0x48] sm:$0xff]
    %v153 = vld [vmem:[#allocation4 + $0x50] sm:$0x11]
    %v154 = vld [vmem:[%s2] sm:$0x3]
    %v156 = vlaneseq
    %v157 = vshrl.u32 %v156, 7
    %v158 = vsub.s32 0, %v157
    %v159 = vrot.slane %v154, %v158
    %v160 = vlaneseq
    %v161 = vshrl.u32 %v160, 7
    %v162 = vsub.s32 1, %v161
    %v163 = vrot.slane %v154, %v162
    %v174 = vunpack.c.l.b16 %v135
    %v175 = vunpack.c.l.b16 %v136
    %v176 = vunpack.c.l.b16 %v137
    %v177 = vunpack.c.l.b16 %v138
    %v178 = vunpack.c.l.b16 %v139
    %v179 = vunpack.c.l.b16 %v140
    %v180 = vunpack.c.l.b16 %v141
    %v181 = vunpack.c.l.b16 %v142
    %v182 = vrot.slane %v175, 7
    %vm183 = vcmask 1041409
    %v184 = vsel %vm183, %v182, %v174
    %v185 = vrot.slane %v176, 6
    %vm186 = vcmask 1042434
    %v187 = vsel %vm186, %v185, %v184
    %v188 = vrot.slane %v177, 5
    %vm189 = vcmask 1043459
    %v190 = vsel %vm189, %v188, %v187
    %v191 = vrot.slane %v178, 4
    %vm192 = vcmask 1044484
    %v193 = vsel %vm192, %v191, %v190
    %v194 = vrot.slane %v179, 3
    %vm195 = vcmask 1045509
    %v196 = vsel %vm195, %v194, %v193
    %v197 = vrot.slane %v180, 2
    %vm198 = vcmask 1046534
    %v199 = vsel %vm198, %v197, %v196
    %v200 = vrot.slane %v181, 1
    %vm201 = vcmask 1047559
    %v202 = vsel %vm201, %v200, %v199
    %v203 = vpack.c.b16 %v202, %v202
    %v215 = vunpack.c.l.b16 %v143
    %v216 = vunpack.c.h.b16 %v143
    %v217 = vunpack.c.l.b16 %v144
    %v218 = vunpack.c.h.b16 %v144
    %v219 = vunpack.c.l.b16 %v145
    %v220 = vunpack.c.h.b16 %v145
    %v221 = vunpack.c.l.b16 %v146
    %v222 = vunpack.c.h.b16 %v146
    %v223 = vunpack.c.l.b16 %v147
    %v224 = vunpack.c.h.b16 %v147
    %v225 = vunpack.c.l.b16 %v148
    %v226 = vunpack.c.h.b16 %v148
    %v227 = vunpack.c.l.b16 %v149
    %v228 = vunpack.c.h.b16 %v149
    %v229 = vunpack.c.l.b16 %v150
    %v230 = vunpack.c.h.b16 %v150
    %v231 = vunpack.c.l.b16 %v151
    %v232 = vunpack.c.h.b16 %v151
    %v233 = vunpack.c.l.b16 %v152
    %v234 = vunpack.c.h.b16 %v152
    %v235 = vunpack.c.l.b16 %v153
    %v236 = vunpack.c.h.b16 %v153
    %v237 = vpack.c.b16 %v217, %v215
    %v238 = vpack.c.b16 %v218, %v216
    %v239 = vpack.c.b16 %v221, %v219
    %v240 = vpack.c.b16 %v222, %v220
    %v241 = vpack.c.b16 %v225, %v223
    %v242 = vpack.c.b16 %v226, %v224
    %v243 = vpack.c.b16 %v229, %v227
    %v244 = vpack.c.b16 %v230, %v228
    %v245 = vpack.c.b16 %v233, %v231
    %v246 = vpack.c.b16 %v234, %v232
    %v247 = vpack.c.b16 %v235, %v235
    %v248 = vpack.c.b16 %v236, %v236
    %vm259 = vcmask 670720
    %v261 = vsel %vm259, %v203, 0
    %vm263 = vcmask 1040384
    %v265 = vsel %vm263, %v247, 0
    %v268 = vsel %vm263, %v248, 0
    %270 = vmatprep.subr.bf16.mxu0 %v238
    %271 = vmatpush1.bf16.msra.mxu0 %v237
    %272 = vmatprep.subr.bf16.mxu0 %v240
    %273 = vmatpush1.bf16.msra.mxu0 %v239
    %274 = vmatprep.subr.bf16.mxu0 %v242
    %275 = vmatpush1.bf16.msra.mxu0 %v241
    %276 = vmatprep.subr.bf16.mxu0 %v244
    %277 = vmatpush1.bf16.msra.mxu0 %v243
    %278 = vmatprep.subr.bf16.mxu0 %v246
    %279 = vmatpush1.bf16.msra.mxu0 %v245
    %280 = vmatprep.subr.bf16.mxu0 %v268
    %281 = vmatpush1.bf16.msra.mxu0 %v265
    %282 = vmatprep.subr.bf16.mxu0 0
    %283 = vmatpush1.bf16.msra.mxu0 0
    %284 = vmatprep.subr.bf16.mxu0 0
    %285 = vmatpush1.bf16.msra.mxu0 0
    %286 = vmatprep.subr.bf16.mxu0 0
    %287 = vmatpush1.bf16.msra.mxu0 0
    %288 = vmatprep.subr.bf16.mxu0 0
    %289 = vmatpush1.bf16.msra.mxu0 0
    %290 = vmatprep.subr.bf16.mxu0 0
    %291 = vmatpush1.bf16.msra.mxu0 0
    %292 = vmatprep.subr.bf16.mxu0 0
    %293 = vmatpush1.bf16.msra.mxu0 0
    %294 = vmatprep.subr.bf16.mxu0 0
    %295 = vmatpush1.bf16.msra.mxu0 0
    %296 = vmatprep.subr.bf16.mxu0 0
    %297 = vmatpush1.bf16.msra.mxu0 0
    %298 = vmatprep.subr.bf16.mxu0 0
    %299 = vmatpush1.bf16.msra.mxu0 0
    %300 = vmatprep.subr.bf16.mxu0 0
    %301 = vmatpush1.bf16.msra.mxu0 0
    %302 = vmatprep.mubr.bf16.mxu0 0
    %303 = vmatmul.mubr.bf16.gmra.mrb[0].mxu0 %v261
    %v304 = vpop.f32.mrb[0].mxu0
    %v305 = vadd.f32 %v159, %v304
    %v306 = vpop.f32.mrb[0].mxu0
    %v307 = vadd.f32 %v163, %v306
    %v308 = vpop.f32.mrb[0].mxu0
    %v309 = vpop.f32.mrb[0].mxu0
    %310 = vdwg.mxu0
    %vm311 = vcmask 523264
    %v312 = vsel %vm311, %v307, 0.0
    %v313 = vadd.f32 %v305, %v312
    %314 = vadd.xlane.f32.xlu0 %v313
    %v315 = vpop.xlane.xlu0 %314
    %v316 = vmul.f32 %v315, 0.0052083335
    %v317 = vmul.f32 %v305, %v305
    %v318 = vmul.f32 %v307, %v307
    %v319 = vsel %vm311, %v318, 0.0
    %v320 = vadd.f32 %v317, %v319
    %321 = vadd.xlane.f32.xlu0 %v320
    %v322 = vpop.xlane.xlu0 %321
    %v323 = vmul.f32 %v322, 0.0052083335
    %v324 = vmul.f32 %v316, %v316
    %v325 = vsub.f32 %v323, %v324
    %v326 = vsub.f32 %v305, %v316
    %v327 = vsub.f32 %v307, %v316
    %v328 = vmax.f32 %v325, 0.0
    %v329 = vadd.f32 %v328, 1e-05
    %v330 = vrsqrt.pop %v329
    %v331 = vmul.f32 %v326, %v330
    %v332 = vmul.f32 %v327, %v330
    %v333 = vld [vmem:[%s3] sm:$0x3]
    %v335 = vlaneseq
    %v336 = vshrl.u32 %v335, 7
    %v337 = vsub.s32 0, %v336
    %v338 = vrot.slane %v333, %v337
    %v339 = vlaneseq
    %v340 = vshrl.u32 %v339, 7
    %v341 = vsub.s32 1, %v340
    %v342 = vrot.slane %v333, %v341
    %v345 = vmul.f32 %v331, %v338
    %v346 = vmul.f32 %v332, %v342
    %v347 = vld [vmem:[%s4] sm:$0x3]
    %v349 = vlaneseq
    %v350 = vshrl.u32 %v349, 7
    %v351 = vsub.s32 0, %v350
    %v352 = vrot.slane %v347, %v351
    %v353 = vlaneseq
    %v354 = vshrl.u32 %v353, 7
    %v355 = vsub.s32 1, %v354
    %v356 = vrot.slane %v347, %v355
    %v359 = vadd.f32 %v345, %v352
    %v360 = vadd.f32 %v346, %v356
    %v361 = vmax.f32 %v359, 0.0
    %v362 = vmax.f32 %v360, 0.0
    %v363 = vpack.c.bf16 %v361, %v361
    %v364 = vpack.c.bf16 %v362, %v362
    %v365 = vrot.slane %v174, 1
    %v366 = vsel %vm183, %v175, %v365
    %v367 = vrot.slane %v176, 7
    %v368 = vsel %vm186, %v367, %v366
    %v369 = vrot.slane %v177, 6
    %v370 = vsel %vm189, %v369, %v368
    %v371 = vrot.slane %v178, 5
    %v372 = vsel %vm192, %v371, %v370
    %v373 = vrot.slane %v179, 4
    %v374 = vsel %vm195, %v373, %v372
    %v375 = vrot.slane %v180, 3
    %v376 = vsel %vm198, %v375, %v374
    %v377 = vrot.slane %v181, 2
    %v378 = vsel %vm201, %v377, %v376
    %v379 = vpack.c.b16 %v378, %v378
    %v381 = vsel %vm259, %v379, 0
    %383 = vmatprep.subr.bf16.mxu0 %v238
    %384 = vmatpush1.bf16.msra.mxu0 %v237
    %385 = vmatprep.subr.bf16.mxu0 %v240
    %386 = vmatpush1.bf16.msra.mxu0 %v239
    %387 = vmatprep.subr.bf16.mxu0 %v242
    %388 = vmatpush1.bf16.msra.mxu0 %v241
    %389 = vmatprep.subr.bf16.mxu0 %v244
    %390 = vmatpush1.bf16.msra.mxu0 %v243
    %391 = vmatprep.subr.bf16.mxu0 %v246
    %392 = vmatpush1.bf16.msra.mxu0 %v245
    %393 = vmatprep.subr.bf16.mxu0 %v268
    %394 = vmatpush1.bf16.msra.mxu0 %v265
    %395 = vmatprep.subr.bf16.mxu0 0
    %396 = vmatpush1.bf16.msra.mxu0 0
    %397 = vmatprep.subr.bf16.mxu0 0
    %398 = vmatpush1.bf16.msra.mxu0 0
    %399 = vmatprep.subr.bf16.mxu0 0
    %400 = vmatpush1.bf16.msra.mxu0 0
    %401 = vmatprep.subr.bf16.mxu0 0
    %402 = vmatpush1.bf16.msra.mxu0 0
    %403 = vmatprep.subr.bf16.mxu0 0
    %404 = vmatpush1.bf16.msra.mxu0 0
    %405 = vmatprep.subr.bf16.mxu0 0
    %406 = vmatpush1.bf16.msra.mxu0 0
    %407 = vmatprep.subr.bf16.mxu0 0
    %408 = vmatpush1.bf16.msra.mxu0 0
    %409 = vmatprep.subr.bf16.mxu0 0
    %410 = vmatpush1.bf16.msra.mxu0 0
    %411 = vmatprep.subr.bf16.mxu0 0
    %412 = vmatpush1.bf16.msra.mxu0 0
    %413 = vmatprep.subr.bf16.mxu0 0
    %414 = vmatpush1.bf16.msra.mxu0 0
    %415 = vmatprep.mubr.bf16.mxu0 0
    %416 = vmatmul.mubr.bf16.gmra.mrb[0].mxu0 %v381
    %v417 = vpop.f32.mrb[0].mxu0
    %v418 = vadd.f32 %v159, %v417
    %v419 = vpop.f32.mrb[0].mxu0
    %v420 = vadd.f32 %v163, %v419
    %v421 = vpop.f32.mrb[0].mxu0
    %v422 = vpop.f32.mrb[0].mxu0
    %423 = vdwg.mxu0
    %v424 = vsel %vm311, %v420, 0.0
    %v425 = vadd.f32 %v418, %v424
    %426 = vadd.xlane.f32.xlu0 %v425
    %v427 = vpop.xlane.xlu0 %426
    %v428 = vmul.f32 %v427, 0.0052083335
    %v429 = vmul.f32 %v418, %v418
    %v430 = vmul.f32 %v420, %v420
    %v431 = vsel %vm311, %v430, 0.0
    %v432 = vadd.f32 %v429, %v431
    %433 = vadd.xlane.f32.xlu0 %v432
    %v434 = vpop.xlane.xlu0 %433
    %v435 = vmul.f32 %v434, 0.0052083335
    %v436 = vmul.f32 %v428, %v428
    %v437 = vsub.f32 %v435, %v436
    %v438 = vsub.f32 %v418, %v428
    %v439 = vsub.f32 %v420, %v428
    %v440 = vmax.f32 %v437, 0.0
    %v441 = vadd.f32 %v440, 1e-05
    %v442 = vrsqrt.pop %v441
    %v443 = vmul.f32 %v438, %v442
    %v444 = vmul.f32 %v439, %v442
    %v445 = vmul.f32 %v443, %v338
    %v446 = vmul.f32 %v444, %v342
    %v447 = vadd.f32 %v445, %v352
    %v448 = vadd.f32 %v446, %v356
    %v449 = vmax.f32 %v447, 0.0
    %v450 = vmax.f32 %v448, 0.0
    %v451 = vpack.c.bf16 %v449, %v449
    %v452 = vpack.c.bf16 %v450, %v450
    %v453 = vld [vmem:[%s11] ss:$2 sm:$0x3]
    %v454 = vld [vmem:[#allocation6] sm:$0xff]
    %v455 = vld [vmem:[#allocation6 + $0x8] sm:$0xff]
    %v456 = vld [vmem:[#allocation6 + $0x10] sm:$0xff]
    %v457 = vld [vmem:[#allocation6 + $0x18] sm:$0xff]
    %v458 = vld [vmem:[#allocation6 + $0x20] sm:$0xff]
    %v459 = vld [vmem:[#allocation6 + $0x28] sm:$0xff]
    %v460 = vld [vmem:[#allocation6 + $0x30] sm:$0xff]
    %v461 = vld [vmem:[#allocation6 + $0x38] sm:$0xff]
    %v462 = vld [vmem:[#allocation6 + $0x40] sm:$0xff]
    %v463 = vld [vmem:[#allocation6 + $0x48] sm:$0xff]
    %v464 = vld [vmem:[#allocation6 + $0x50] sm:$0xff]
    %v465 = vld [vmem:[#allocation6 + $0x58] sm:$0xff]
    %v466 = vld [vmem:[#allocation6 + $0x60] sm:$0xff]
    %v467 = vld [vmem:[#allocation6 + $0x68] sm:$0xff]
    %v468 = vld [vmem:[#allocation6 + $0x70] sm:$0xff]
    %v469 = vld [vmem:[#allocation6 + $0x78] sm:$0xff]
    %v470 = vld [vmem:[#allocation6 + $0x80] sm:$0xff]
    %v471 = vld [vmem:[#allocation6 + $0x88] sm:$0xff]
    %v472 = vld [vmem:[#allocation6 + $0x90] sm:$0xff]
    %v473 = vld [vmem:[#allocation6 + $0x98] sm:$0xff]
    %v474 = vld [vmem:[#allocation6 + $0xa0] sm:$0xff]
    %v475 = vld [vmem:[#allocation6 + $0xa8] sm:$0xff]
    %v476 = vld [vmem:[#allocation6 + $0xb0] sm:$0xff]
    %v477 = vld [vmem:[#allocation6 + $0xb8] sm:$0xff]
    %v478 = vld [vmem:[#allocation7] sm:$0xff]
    %v479 = vld [vmem:[#allocation7 + $0x8] sm:$0xff]
    %v480 = vld [vmem:[#allocation7 + $0x10] sm:$0xff]
    %v481 = vld [vmem:[#allocation7 + $0x18] sm:$0xff]
    %v482 = vld [vmem:[#allocation7 + $0x20] sm:$0xff]
    %v483 = vld [vmem:[#allocation7 + $0x28] sm:$0xff]
    %v484 = vld [vmem:[#allocation7 + $0x30] sm:$0xff]
    %v485 = vld [vmem:[#allocation7 + $0x38] sm:$0xff]
    %v486 = vld [vmem:[#allocation7 + $0x40] sm:$0xff]
    %v487 = vld [vmem:[#allocation7 + $0x48] sm:$0xff]
    %v488 = vld [vmem:[#allocation7 + $0x50] sm:$0xff]
    %v489 = vld [vmem:[#allocation7 + $0x58] sm:$0xff]
    %v490 = vld [vmem:[#allocation7 + $0x60] sm:$0xff]
    %v491 = vld [vmem:[#allocation7 + $0x68] sm:$0xff]
    %v492 = vld [vmem:[#allocation7 + $0x70] sm:$0xff]
    %v493 = vld [vmem:[#allocation7 + $0x78] sm:$0xff]
    %v494 = vld [vmem:[#allocation7 + $0x80] sm:$0xff]
    %v495 = vld [vmem:[#allocation7 + $0x88] sm:$0xff]
    %v496 = vld [vmem:[#allocation7 + $0x90] sm:$0xff]
    %v497 = vld [vmem:[#allocation7 + $0x98] sm:$0xff]
    %v498 = vld [vmem:[#allocation7 + $0xa0] sm:$0xff]
    %v499 = vld [vmem:[#allocation7 + $0xa8] sm:$0xff]
    %v500 = vld [vmem:[#allocation7 + $0xb0] sm:$0xff]
    %v501 = vld [vmem:[#allocation7 + $0xb8] sm:$0xff]
    %v526 = vunpack.c.l.b16 %v478
    %v527 = vunpack.c.h.b16 %v478
    %v528 = vunpack.c.l.b16 %v479
    %v529 = vunpack.c.h.b16 %v479
    %v530 = vunpack.c.l.b16 %v480
    %v531 = vunpack.c.h.b16 %v480
    %v532 = vunpack.c.l.b16 %v481
    %v533 = vunpack.c.h.b16 %v481
    %v534 = vunpack.c.l.b16 %v482
    %v535 = vunpack.c.h.b16 %v482
    %v536 = vunpack.c.l.b16 %v483
    %v537 = vunpack.c.h.b16 %v483
    %v538 = vunpack.c.l.b16 %v484
    %v539 = vunpack.c.h.b16 %v484
    %v540 = vunpack.c.l.b16 %v485
    %v541 = vunpack.c.h.b16 %v485
    %v542 = vunpack.c.l.b16 %v486
    %v543 = vunpack.c.h.b16 %v486
    %v544 = vunpack.c.l.b16 %v487
    %v545 = vunpack.c.h.b16 %v487
    %v546 = vunpack.c.l.b16 %v488
    %v547 = vunpack.c.h.b16 %v488
    %v548 = vunpack.c.l.b16 %v489
    %v549 = vunpack.c.h.b16 %v489
    %v550 = vunpack.c.l.b16 %v490
    %v551 = vunpack.c.h.b16 %v490
    %v552 = vunpack.c.l.b16 %v491
    %v553 = vunpack.c.h.b16 %v491
    %v554 = vunpack.c.l.b16 %v492
    %v555 = vunpack.c.h.b16 %v492
    %v556 = vunpack.c.l.b16 %v493
    %v557 = vunpack.c.h.b16 %v493
    %v558 = vunpack.c.l.b16 %v494
    %v559 = vunpack.c.h.b16 %v494
    %v560 = vunpack.c.l.b16 %v495
    %v561 = vunpack.c.h.b16 %v495
    %v562 = vunpack.c.l.b16 %v496
    %v563 = vunpack.c.h.b16 %v496
    %v564 = vunpack.c.l.b16 %v497
    %v565 = vunpack.c.h.b16 %v497
    %v566 = vunpack.c.l.b16 %v498
    %v567 = vunpack.c.h.b16 %v498
    %v568 = vunpack.c.l.b16 %v499
    %v569 = vunpack.c.h.b16 %v499
    %v570 = vunpack.c.l.b16 %v500
    %v571 = vunpack.c.h.b16 %v500
    %v572 = vunpack.c.l.b16 %v501
    %v573 = vunpack.c.h.b16 %v501
    %v574 = vpack.c.b16 %v528, %v526
    %v575 = vpack.c.b16 %v529, %v527
    %v576 = vpack.c.b16 %v532, %v530
    %v577 = vpack.c.b16 %v533, %v531
    %v578 = vpack.c.b16 %v536, %v534
    %v579 = vpack.c.b16 %v537, %v535
    %v580 = vpack.c.b16 %v540, %v538
    %v581 = vpack.c.b16 %v541, %v539
    %v582 = vpack.c.b16 %v544, %v542
    %v583 = vpack.c.b16 %v545, %v543
    %v584 = vpack.c.b16 %v548, %v546
    %v585 = vpack.c.b16 %v549, %v547
    %v586 = vpack.c.b16 %v552, %v550
    %v587 = vpack.c.b16 %v553, %v551
    %v588 = vpack.c.b16 %v556, %v554
    %v589 = vpack.c.b16 %v557, %v555
    %v590 = vpack.c.b16 %v560, %v558
    %v591 = vpack.c.b16 %v561, %v559
    %v592 = vpack.c.b16 %v564, %v562
    %v593 = vpack.c.b16 %v565, %v563
    %v594 = vpack.c.b16 %v568, %v566
    %v595 = vpack.c.b16 %v569, %v567
    %v596 = vpack.c.b16 %v572, %v570
    %v597 = vpack.c.b16 %v573, %v571
    %v623 = vsel %vm311, %v364, 0
    %625 = vmatprep.subr.bf16.mxu0 %v575
    %626 = vmatpush1.bf16.msra.mxu0 %v574
    %627 = vmatprep.subr.bf16.mxu0 %v577
    %628 = vmatpush1.bf16.msra.mxu0 %v576
    %629 = vmatprep.subr.bf16.mxu0 %v579
    %630 = vmatpush1.bf16.msra.mxu0 %v578
    %631 = vmatprep.subr.bf16.mxu0 %v581
    %632 = vmatpush1.bf16.msra.mxu0 %v580
    %633 = vmatprep.subr.bf16.mxu0 %v583
    %634 = vmatpush1.bf16.msra.mxu0 %v582
    %635 = vmatprep.subr.bf16.mxu0 %v585
    %636 = vmatpush1.bf16.msra.mxu0 %v584
    %637 = vmatprep.subr.bf16.mxu0 %v587
    %638 = vmatpush1.bf16.msra.mxu0 %v586
    %639 = vmatprep.subr.bf16.mxu0 %v589
    %640 = vmatpush1.bf16.msra.mxu0 %v588
    %641 = vmatprep.subr.bf16.mxu0 %v591
    %642 = vmatpush1.bf16.msra.mxu0 %v590
    %643 = vmatprep.subr.bf16.mxu0 %v593
    %644 = vmatpush1.bf16.msra.mxu0 %v592
    %645 = vmatprep.subr.bf16.mxu0 %v595
    %646 = vmatpush1.bf16.msra.mxu0 %v594
    %647 = vmatprep.subr.bf16.mxu0 %v597
    %648 = vmatpush1.bf16.msra.mxu0 %v596
    %649 = vmatprep.subr.bf16.mxu0 0
    %650 = vmatpush1.bf16.msra.mxu0 0
    %651 = vmatprep.subr.bf16.mxu0 0
    %652 = vmatpush1.bf16.msra.mxu0 0
    %653 = vmatprep.subr.bf16.mxu0 0
    %654 = vmatpush1.bf16.msra.mxu0 0
    %655 = vmatprep.subr.bf16.mxu0 0
    %656 = vmatpush1.bf16.msra.mxu0 0
    %657 = vmatprep.mubr.bf16.mxu0 %v623
    %658 = vmatmul.mubr.bf16.gmra.mrb[0].mxu0 %v363
    %v659 = vpop.f32.mrb[0].mxu0
    %v660 = vadd.f32 0.0, %v659
    %v661 = vpop.f32.mrb[0].mxu0
    %v662 = vadd.f32 0.0, %v661
    %v663 = vpop.f32.mrb[0].mxu0
    %v664 = vpop.f32.mrb[0].mxu0
    %665 = vdwg.mxu0
    %v690 = vunpack.c.l.b16 %v454
    %v691 = vunpack.c.h.b16 %v454
    %v692 = vunpack.c.l.b16 %v455
    %v693 = vunpack.c.h.b16 %v455
    %v694 = vunpack.c.l.b16 %v456
    %v695 = vunpack.c.h.b16 %v456
    %v696 = vunpack.c.l.b16 %v457
    %v697 = vunpack.c.h.b16 %v457
    %v698 = vunpack.c.l.b16 %v458
    %v699 = vunpack.c.h.b16 %v458
    %v700 = vunpack.c.l.b16 %v459
    %v701 = vunpack.c.h.b16 %v459
    %v702 = vunpack.c.l.b16 %v460
    %v703 = vunpack.c.h.b16 %v460
    %v704 = vunpack.c.l.b16 %v461
    %v705 = vunpack.c.h.b16 %v461
    %v706 = vunpack.c.l.b16 %v462
    %v707 = vunpack.c.h.b16 %v462
    %v708 = vunpack.c.l.b16 %v463
    %v709 = vunpack.c.h.b16 %v463
    %v710 = vunpack.c.l.b16 %v464
    %v711 = vunpack.c.h.b16 %v464
    %v712 = vunpack.c.l.b16 %v465
    %v713 = vunpack.c.h.b16 %v465
    %v714 = vunpack.c.l.b16 %v466
    %v715 = vunpack.c.h.b16 %v466
    %v716 = vunpack.c.l.b16 %v467
    %v717 = vunpack.c.h.b16 %v467
    %v718 = vunpack.c.l.b16 %v468
    %v719 = vunpack.c.h.b16 %v468
    %v720 = vunpack.c.l.b16 %v469
    %v721 = vunpack.c.h.b16 %v469
    %v722 = vunpack.c.l.b16 %v470
    %v723 = vunpack.c.h.b16 %v470
    %v724 = vunpack.c.l.b16 %v471
    %v725 = vunpack.c.h.b16 %v471
    %v726 = vunpack.c.l.b16 %v472
    %v727 = vunpack.c.h.b16 %v472
    %v728 = vunpack.c.l.b16 %v473
    %v729 = vunpack.c.h.b16 %v473
    %v730 = vunpack.c.l.b16 %v474
    %v731 = vunpack.c.h.b16 %v474
    %v732 = vunpack.c.l.b16 %v475
    %v733 = vunpack.c.h.b16 %v475
    %v734 = vunpack.c.l.b16 %v476
    %v735 = vunpack.c.h.b16 %v476
    %v736 = vunpack.c.l.b16 %v477
    %v737 = vunpack.c.h.b16 %v477
    %v738 = vpack.c.b16 %v692, %v690
    %v739 = vpack.c.b16 %v693, %v691
    %v740 = vpack.c.b16 %v696, %v694
    %v741 = vpack.c.b16 %v697, %v695
    %v742 = vpack.c.b16 %v700, %v698
    %v743 = vpack.c.b16 %v701, %v699
    %v744 = vpack.c.b16 %v704, %v702
    %v745 = vpack.c.b16 %v705, %v703
    %v746 = vpack.c.b16 %v708, %v706
    %v747 = vpack.c.b16 %v709, %v707
    %v748 = vpack.c.b16 %v712, %v710
    %v749 = vpack.c.b16 %v713, %v711
    %v750 = vpack.c.b16 %v716, %v714
    %v751 = vpack.c.b16 %v717, %v715
    %v752 = vpack.c.b16 %v720, %v718
    %v753 = vpack.c.b16 %v721, %v719
    %v754 = vpack.c.b16 %v724, %v722
    %v755 = vpack.c.b16 %v725, %v723
    %v756 = vpack.c.b16 %v728, %v726
    %v757 = vpack.c.b16 %v729, %v727
    %v758 = vpack.c.b16 %v732, %v730
    %v759 = vpack.c.b16 %v733, %v731
    %v760 = vpack.c.b16 %v736, %v734
    %v761 = vpack.c.b16 %v737, %v735
    %v787 = vsel %vm311, %v452, 0
    %789 = vmatprep.subr.bf16.mxu0 %v739
    %790 = vmatpush1.bf16.msra.mxu0 %v738
    %791 = vmatprep.subr.bf16.mxu0 %v741
    %792 = vmatpush1.bf16.msra.mxu0 %v740
    %793 = vmatprep.subr.bf16.mxu0 %v743
    %794 = vmatpush1.bf16.msra.mxu0 %v742
    %795 = vmatprep.subr.bf16.mxu0 %v745
    %796 = vmatpush1.bf16.msra.mxu0 %v744
    %797 = vmatprep.subr.bf16.mxu0 %v747
    %798 = vmatpush1.bf16.msra.mxu0 %v746
    %799 = vmatprep.subr.bf16.mxu0 %v749
    %800 = vmatpush1.bf16.msra.mxu0 %v748
    %801 = vmatprep.subr.bf16.mxu0 %v751
    %802 = vmatpush1.bf16.msra.mxu0 %v750
    %803 = vmatprep.subr.bf16.mxu0 %v753
    %804 = vmatpush1.bf16.msra.mxu0 %v752
    %805 = vmatprep.subr.bf16.mxu0 %v755
    %806 = vmatpush1.bf16.msra.mxu0 %v754
    %807 = vmatprep.subr.bf16.mxu0 %v757
    %808 = vmatpush1.bf16.msra.mxu0 %v756
    %809 = vmatprep.subr.bf16.mxu0 %v759
    %810 = vmatpush1.bf16.msra.mxu0 %v758
    %811 = vmatprep.subr.bf16.mxu0 %v761
    %812 = vmatpush1.bf16.msra.mxu0 %v760
    %813 = vmatprep.subr.bf16.mxu0 0
    %814 = vmatpush1.bf16.msra.mxu0 0
    %815 = vmatprep.subr.bf16.mxu0 0
    %816 = vmatpush1.bf16.msra.mxu0 0
    %817 = vmatprep.subr.bf16.mxu0 0
    %818 = vmatpush1.bf16.msra.mxu0 0
    %819 = vmatprep.subr.bf16.mxu0 0
    %820 = vmatpush1.bf16.msra.mxu0 0
    %821 = vmatprep.mubr.bf16.mxu0 %v787
    %822 = vmatmul.mubr.bf16.gmra.mrb[0].mxu0 %v451
    %v823 = vpop.f32.mrb[0].mxu0
    %v824 = vadd.f32 %v660, %v823
    %v825 = vpop.f32.mrb[0].mxu0
    %v826 = vadd.f32 %v662, %v825
    %v827 = vpop.f32.mrb[0].mxu0
    %v828 = vpop.f32.mrb[0].mxu0
    %829 = vdwg.mxu0
    %v830 = vld [vmem:[%s7] sm:$0x3]
    %v832 = vlaneseq
    %v833 = vshrl.u32 %v832, 7
    %v834 = vsub.s32 0, %v833
    %v835 = vrot.slane %v830, %v834
    %v836 = vlaneseq
    %v837 = vshrl.u32 %v836, 7
    %v838 = vsub.s32 1, %v837
    %v839 = vrot.slane %v830, %v838
    %v842 = vadd.f32 %v824, %v835
    %v843 = vadd.f32 %v826, %v839
    %v844 = vmax.f32 %v842, 0.0
    %v845 = vmax.f32 %v843, 0.0
    %v847 = vlaneseq
    %v848 = vshrl.u32 %v847, 7
    %v849 = vsub.s32 0, %v848
    %v850 = vrot.slane %v453, %v849
    %v851 = vlaneseq
    %v852 = vshrl.u32 %v851, 7
    %v853 = vsub.s32 1, %v852
    %v854 = vrot.slane %v453, %v853
    %v857 = vmul.f32 %v844, %v850
    %v858 = vmul.f32 %v845, %v854
    %v859 = vsel %vm311, %v858, 0.0
    %v860 = vadd.f32 %v857, %v859
    %861 = vadd.xlane.f32.xlu0 %v860
    %v862 = vpop.xlane.xlu0 %861
    %s863 = scalar_lea.vmem %s11, 1
    %v864 = vld [vmem:[%s863] ss:$2 sm:$0x3]
    %v865 = vld [vmem:[#allocation9] sm:$0xff]
    %v866 = vld [vmem:[#allocation9 + $0x8] sm:$0xff]
    %v867 = vld [vmem:[#allocation9 + $0x10] sm:$0xff]
    %v868 = vld [vmem:[#allocation9 + $0x18] sm:$0xff]
    %v869 = vld [vmem:[#allocation9 + $0x20] sm:$0xff]
    %v870 = vld [vmem:[#allocation9 + $0x28] sm:$0xff]
    %v871 = vld [vmem:[#allocation9 + $0x30] sm:$0xff]
    %v872 = vld [vmem:[#allocation9 + $0x38] sm:$0xff]
    %v873 = vld [vmem:[#allocation9 + $0x40] sm:$0xff]
    %v874 = vld [vmem:[#allocation9 + $0x48] sm:$0xff]
    %v875 = vld [vmem:[#allocation9 + $0x50] sm:$0xff]
    %v876 = vld [vmem:[#allocation9 + $0x58] sm:$0xff]
    %v877 = vld [vmem:[#allocation9 + $0x60] sm:$0xff]
    %v878 = vld [vmem:[#allocation9 + $0x68] sm:$0xff]
    %v879 = vld [vmem:[#allocation9 + $0x70] sm:$0xff]
    %v880 = vld [vmem:[#allocation9 + $0x78] sm:$0xff]
    %v881 = vld [vmem:[#allocation9 + $0x80] sm:$0xff]
    %v882 = vld [vmem:[#allocation9 + $0x88] sm:$0xff]
    %v883 = vld [vmem:[#allocation9 + $0x90] sm:$0xff]
    %v884 = vld [vmem:[#allocation9 + $0x98] sm:$0xff]
    %v885 = vld [vmem:[#allocation9 + $0xa0] sm:$0xff]
    %v886 = vld [vmem:[#allocation9 + $0xa8] sm:$0xff]
    %v887 = vld [vmem:[#allocation9 + $0xb0] sm:$0xff]
    %v888 = vld [vmem:[#allocation9 + $0xb8] sm:$0xff]
    %v889 = vld [vmem:[#allocation10] sm:$0xff]
    %v890 = vld [vmem:[#allocation10 + $0x8] sm:$0xff]
    %v891 = vld [vmem:[#allocation10 + $0x10] sm:$0xff]
    %v892 = vld [vmem:[#allocation10 + $0x18] sm:$0xff]
    %v893 = vld [vmem:[#allocation10 + $0x20] sm:$0xff]
    %v894 = vld [vmem:[#allocation10 + $0x28] sm:$0xff]
    %v895 = vld [vmem:[#allocation10 + $0x30] sm:$0xff]
    %v896 = vld [vmem:[#allocation10 + $0x38] sm:$0xff]
    %v897 = vld [vmem:[#allocation10 + $0x40] sm:$0xff]
    %v898 = vld [vmem:[#allocation10 + $0x48] sm:$0xff]
    %v899 = vld [vmem:[#allocation10 + $0x50] sm:$0xff]
    %v900 = vld [vmem:[#allocation10 + $0x58] sm:$0xff]
    %v901 = vld [vmem:[#allocation10 + $0x60] sm:$0xff]
    %v902 = vld [vmem:[#allocation10 + $0x68] sm:$0xff]
    %v903 = vld [vmem:[#allocation10 + $0x70] sm:$0xff]
    %v904 = vld [vmem:[#allocation10 + $0x78] sm:$0xff]
    %v905 = vld [vmem:[#allocation10 + $0x80] sm:$0xff]
    %v906 = vld [vmem:[#allocation10 + $0x88] sm:$0xff]
    %v907 = vld [vmem:[#allocation10 + $0x90] sm:$0xff]
    %v908 = vld [vmem:[#allocation10 + $0x98] sm:$0xff]
    %v909 = vld [vmem:[#allocation10 + $0xa0] sm:$0xff]
    %v910 = vld [vmem:[#allocation10 + $0xa8] sm:$0xff]
    %v911 = vld [vmem:[#allocation10 + $0xb0] sm:$0xff]
    %v912 = vld [vmem:[#allocation10 + $0xb8] sm:$0xff]
    %v937 = vunpack.c.l.b16 %v889
    %v938 = vunpack.c.h.b16 %v889
    %v939 = vunpack.c.l.b16 %v890
    %v940 = vunpack.c.h.b16 %v890
    %v941 = vunpack.c.l.b16 %v891
    %v942 = vunpack.c.h.b16 %v891
    %v943 = vunpack.c.l.b16 %v892
    %v944 = vunpack.c.h.b16 %v892
    %v945 = vunpack.c.l.b16 %v893
    %v946 = vunpack.c.h.b16 %v893
    %v947 = vunpack.c.l.b16 %v894
    %v948 = vunpack.c.h.b16 %v894
    %v949 = vunpack.c.l.b16 %v895
    %v950 = vunpack.c.h.b16 %v895
    %v951 = vunpack.c.l.b16 %v896
    %v952 = vunpack.c.h.b16 %v896
    %v953 = vunpack.c.l.b16 %v897
    %v954 = vunpack.c.h.b16 %v897
    %v955 = vunpack.c.l.b16 %v898
    %v956 = vunpack.c.h.b16 %v898
    %v957 = vunpack.c.l.b16 %v899
    %v958 = vunpack.c.h.b16 %v899
    %v959 = vunpack.c.l.b16 %v900
    %v960 = vunpack.c.h.b16 %v900
    %v961 = vunpack.c.l.b16 %v901
    %v962 = vunpack.c.h.b16 %v901
    %v963 = vunpack.c.l.b16 %v902
    %v964 = vunpack.c.h.b16 %v902
    %v965 = vunpack.c.l.b16 %v903
    %v966 = vunpack.c.h.b16 %v903
    %v967 = vunpack.c.l.b16 %v904
    %v968 = vunpack.c.h.b16 %v904
    %v969 = vunpack.c.l.b16 %v905
    %v970 = vunpack.c.h.b16 %v905
    %v971 = vunpack.c.l.b16 %v906
    %v972 = vunpack.c.h.b16 %v906
    %v973 = vunpack.c.l.b16 %v907
    %v974 = vunpack.c.h.b16 %v907
    %v975 = vunpack.c.l.b16 %v908
    %v976 = vunpack.c.h.b16 %v908
    %v977 = vunpack.c.l.b16 %v909
    %v978 = vunpack.c.h.b16 %v909
    %v979 = vunpack.c.l.b16 %v910
    %v980 = vunpack.c.h.b16 %v910
    %v981 = vunpack.c.l.b16 %v911
    %v982 = vunpack.c.h.b16 %v911
    %v983 = vunpack.c.l.b16 %v912
    %v984 = vunpack.c.h.b16 %v912
    %v985 = vpack.c.b16 %v939, %v937
    %v986 = vpack.c.b16 %v940, %v938
    %v987 = vpack.c.b16 %v943, %v941
    %v988 = vpack.c.b16 %v944, %v942
    %v989 = vpack.c.b16 %v947, %v945
    %v990 = vpack.c.b16 %v948, %v946
    %v991 = vpack.c.b16 %v951, %v949
    %v992 = vpack.c.b16 %v952, %v950
    %v993 = vpack.c.b16 %v955, %v953
    %v994 = vpack.c.b16 %v956, %v954
    %v995 = vpack.c.b16 %v959, %v957
    %v996 = vpack.c.b16 %v960, %v958
    %v997 = vpack.c.b16 %v963, %v961
    %v998 = vpack.c.b16 %v964, %v962
    %v999 = vpack.c.b16 %v967, %v965
    %v1000 = vpack.c.b16 %v968, %v966
    %v1001 = vpack.c.b16 %v971, %v969
    %v1002 = vpack.c.b16 %v972, %v970
    %v1003 = vpack.c.b16 %v975, %v973
    %v1004 = vpack.c.b16 %v976, %v974
    %v1005 = vpack.c.b16 %v979, %v977
    %v1006 = vpack.c.b16 %v980, %v978
    %v1007 = vpack.c.b16 %v983, %v981
    %v1008 = vpack.c.b16 %v984, %v982
    %1033 = vmatprep.subr.bf16.mxu0 %v986
    %1034 = vmatpush1.bf16.msra.mxu0 %v985
    %1035 = vmatprep.subr.bf16.mxu0 %v988
    %1036 = vmatpush1.bf16.msra.mxu0 %v987
    %1037 = vmatprep.subr.bf16.mxu0 %v990
    %1038 = vmatpush1.bf16.msra.mxu0 %v989
    %1039 = vmatprep.subr.bf16.mxu0 %v992
    %1040 = vmatpush1.bf16.msra.mxu0 %v991
    %1041 = vmatprep.subr.bf16.mxu0 %v994
    %1042 = vmatpush1.bf16.msra.mxu0 %v993
    %1043 = vmatprep.subr.bf16.mxu0 %v996
    %1044 = vmatpush1.bf16.msra.mxu0 %v995
    %1045 = vmatprep.subr.bf16.mxu0 %v998
    %1046 = vmatpush1.bf16.msra.mxu0 %v997
    %1047 = vmatprep.subr.bf16.mxu0 %v1000
    %1048 = vmatpush1.bf16.msra.mxu0 %v999
    %1049 = vmatprep.subr.bf16.mxu0 %v1002
    %1050 = vmatpush1.bf16.msra.mxu0 %v1001
    %1051 = vmatprep.subr.bf16.mxu0 %v1004
    %1052 = vmatpush1.bf16.msra.mxu0 %v1003
    %1053 = vmatprep.subr.bf16.mxu0 %v1006
    %1054 = vmatpush1.bf16.msra.mxu0 %v1005
    %1055 = vmatprep.subr.bf16.mxu0 %v1008
    %1056 = vmatpush1.bf16.msra.mxu0 %v1007
    %1057 = vmatprep.subr.bf16.mxu0 0
    %1058 = vmatpush1.bf16.msra.mxu0 0
    %1059 = vmatprep.subr.bf16.mxu0 0
    %1060 = vmatpush1.bf16.msra.mxu0 0
    %1061 = vmatprep.subr.bf16.mxu0 0
    %1062 = vmatpush1.bf16.msra.mxu0 0
    %1063 = vmatprep.subr.bf16.mxu0 0
    %1064 = vmatpush1.bf16.msra.mxu0 0
    %1065 = vmatprep.mubr.bf16.mxu0 %v623
    %1066 = vmatmul.mubr.bf16.gmra.mrb[0].mxu0 %v363
    %v1067 = vpop.f32.mrb[0].mxu0
    %v1068 = vadd.f32 0.0, %v1067
    %v1069 = vpop.f32.mrb[0].mxu0
    %v1070 = vadd.f32 0.0, %v1069
    %v1071 = vpop.f32.mrb[0].mxu0
    %v1072 = vpop.f32.mrb[0].mxu0
    %1073 = vdwg.mxu0
    %v1098 = vunpack.c.l.b16 %v865
    %v1099 = vunpack.c.h.b16 %v865
    %v1100 = vunpack.c.l.b16 %v866
    %v1101 = vunpack.c.h.b16 %v866
    %v1102 = vunpack.c.l.b16 %v867
    %v1103 = vunpack.c.h.b16 %v867
    %v1104 = vunpack.c.l.b16 %v868
    %v1105 = vunpack.c.h.b16 %v868
    %v1106 = vunpack.c.l.b16 %v869
    %v1107 = vunpack.c.h.b16 %v869
    %v1108 = vunpack.c.l.b16 %v870
    %v1109 = vunpack.c.h.b16 %v870
    %v1110 = vunpack.c.l.b16 %v871
    %v1111 = vunpack.c.h.b16 %v871
    %v1112 = vunpack.c.l.b16 %v872
    %v1113 = vunpack.c.h.b16 %v872
    %v1114 = vunpack.c.l.b16 %v873
    %v1115 = vunpack.c.h.b16 %v873
    %v1116 = vunpack.c.l.b16 %v874
    %v1117 = vunpack.c.h.b16 %v874
    %v1118 = vunpack.c.l.b16 %v875
    %v1119 = vunpack.c.h.b16 %v875
    %v1120 = vunpack.c.l.b16 %v876
    %v1121 = vunpack.c.h.b16 %v876
    %v1122 = vunpack.c.l.b16 %v877
    %v1123 = vunpack.c.h.b16 %v877
    %v1124 = vunpack.c.l.b16 %v878
    %v1125 = vunpack.c.h.b16 %v878
    %v1126 = vunpack.c.l.b16 %v879
    %v1127 = vunpack.c.h.b16 %v879
    %v1128 = vunpack.c.l.b16 %v880
    %v1129 = vunpack.c.h.b16 %v880
    %v1130 = vunpack.c.l.b16 %v881
    %v1131 = vunpack.c.h.b16 %v881
    %v1132 = vunpack.c.l.b16 %v882
    %v1133 = vunpack.c.h.b16 %v882
    %v1134 = vunpack.c.l.b16 %v883
    %v1135 = vunpack.c.h.b16 %v883
    %v1136 = vunpack.c.l.b16 %v884
    %v1137 = vunpack.c.h.b16 %v884
    %v1138 = vunpack.c.l.b16 %v885
    %v1139 = vunpack.c.h.b16 %v885
    %v1140 = vunpack.c.l.b16 %v886
    %v1141 = vunpack.c.h.b16 %v886
    %v1142 = vunpack.c.l.b16 %v887
    %v1143 = vunpack.c.h.b16 %v887
    %v1144 = vunpack.c.l.b16 %v888
    %v1145 = vunpack.c.h.b16 %v888
    %v1146 = vpack.c.b16 %v1100, %v1098
    %v1147 = vpack.c.b16 %v1101, %v1099
    %v1148 = vpack.c.b16 %v1104, %v1102
    %v1149 = vpack.c.b16 %v1105, %v1103
    %v1150 = vpack.c.b16 %v1108, %v1106
    %v1151 = vpack.c.b16 %v1109, %v1107
    %v1152 = vpack.c.b16 %v1112, %v1110
    %v1153 = vpack.c.b16 %v1113, %v1111
    %v1154 = vpack.c.b16 %v1116, %v1114
    %v1155 = vpack.c.b16 %v1117, %v1115
    %v1156 = vpack.c.b16 %v1120, %v1118
    %v1157 = vpack.c.b16 %v1121, %v1119
    %v1158 = vpack.c.b16 %v1124, %v1122
    %v1159 = vpack.c.b16 %v1125, %v1123
    %v1160 = vpack.c.b16 %v1128, %v1126
    %v1161 = vpack.c.b16 %v1129, %v1127
    %v1162 = vpack.c.b16 %v1132, %v1130
    %v1163 = vpack.c.b16 %v1133, %v1131
    %v1164 = vpack.c.b16 %v1136, %v1134
    %v1165 = vpack.c.b16 %v1137, %v1135
    %v1166 = vpack.c.b16 %v1140, %v1138
    %v1167 = vpack.c.b16 %v1141, %v1139
    %v1168 = vpack.c.b16 %v1144, %v1142
    %v1169 = vpack.c.b16 %v1145, %v1143
    %1194 = vmatprep.subr.bf16.mxu0 %v1147
    %1195 = vmatpush1.bf16.msra.mxu0 %v1146
    %1196 = vmatprep.subr.bf16.mxu0 %v1149
    %1197 = vmatpush1.bf16.msra.mxu0 %v1148
    %1198 = vmatprep.subr.bf16.mxu0 %v1151
    %1199 = vmatpush1.bf16.msra.mxu0 %v1150
    %1200 = vmatprep.subr.bf16.mxu0 %v1153
    %1201 = vmatpush1.bf16.msra.mxu0 %v1152
    %1202 = vmatprep.subr.bf16.mxu0 %v1155
    %1203 = vmatpush1.bf16.msra.mxu0 %v1154
    %1204 = vmatprep.subr.bf16.mxu0 %v1157
    %1205 = vmatpush1.bf16.msra.mxu0 %v1156
    %1206 = vmatprep.subr.bf16.mxu0 %v1159
    %1207 = vmatpush1.bf16.msra.mxu0 %v1158
    %1208 = vmatprep.subr.bf16.mxu0 %v1161
    %1209 = vmatpush1.bf16.msra.mxu0 %v1160
    %1210 = vmatprep.subr.bf16.mxu0 %v1163
    %1211 = vmatpush1.bf16.msra.mxu0 %v1162
    %1212 = vmatprep.subr.bf16.mxu0 %v1165
    %1213 = vmatpush1.bf16.msra.mxu0 %v1164
    %1214 = vmatprep.subr.bf16.mxu0 %v1167
    %1215 = vmatpush1.bf16.msra.mxu0 %v1166
    %1216 = vmatprep.subr.bf16.mxu0 %v1169
    %1217 = vmatpush1.bf16.msra.mxu0 %v1168
    %1218 = vmatprep.subr.bf16.mxu0 0
    %1219 = vmatpush1.bf16.msra.mxu0 0
    %1220 = vmatprep.subr.bf16.mxu0 0
    %1221 = vmatpush1.bf16.msra.mxu0 0
    %1222 = vmatprep.subr.bf16.mxu0 0
    %1223 = vmatpush1.bf16.msra.mxu0 0
    %1224 = vmatprep.subr.bf16.mxu0 0
    %1225 = vmatpush1.bf16.msra.mxu0 0
    %1226 = vmatprep.mubr.bf16.mxu0 %v787
    %1227 = vmatmul.mubr.bf16.gmra.mrb[0].mxu0 %v451
    %v1228 = vpop.f32.mrb[0].mxu0
    %v1229 = vadd.f32 %v1068, %v1228
    %v1230 = vpop.f32.mrb[0].mxu0
    %v1231 = vadd.f32 %v1070, %v1230
    %v1232 = vpop.f32.mrb[0].mxu0
    %v1233 = vpop.f32.mrb[0].mxu0
    %1234 = vdwg.mxu0
    %v1235 = vld [vmem:[%s10] sm:$0x3]
    %v1237 = vlaneseq
    %v1238 = vshrl.u32 %v1237, 7
    %v1239 = vsub.s32 0, %v1238
    %v1240 = vrot.slane %v1235, %v1239
    %v1241 = vlaneseq
    %v1242 = vshrl.u32 %v1241, 7
    %v1243 = vsub.s32 1, %v1242
    %v1244 = vrot.slane %v1235, %v1243
    %v1247 = vadd.f32 %v1229, %v1240
    %v1248 = vadd.f32 %v1231, %v1244
    %v1249 = vmax.f32 %v1247, 0.0
    %v1250 = vmax.f32 %v1248, 0.0
    %v1252 = vlaneseq
    %v1253 = vshrl.u32 %v1252, 7
    %v1254 = vsub.s32 0, %v1253
    %v1255 = vrot.slane %v864, %v1254
    %v1256 = vlaneseq
    %v1257 = vshrl.u32 %v1256, 7
    %v1258 = vsub.s32 1, %v1257
    %v1259 = vrot.slane %v864, %v1258
    %v1262 = vmul.f32 %v1249, %v1255
    %v1263 = vmul.f32 %v1250, %v1259
    %v1264 = vsel %vm311, %v1263, 0.0
    %v1265 = vadd.f32 %v1262, %v1264
    %1266 = vadd.xlane.f32.xlu0 %v1265
    %v1267 = vpop.xlane.xlu0 %1266
    %vm1268 = vcmask 7168
    %v1269 = vsel %vm1268, %v862, %v1267
    %v1270 = vld [vmem:[%s12] sm:$0x1]
    %v1272 = vlaneseq
    %v1273 = vshrl.u32 %v1272, 7
    %v1274 = vsub.s32 0, %v1273
    %v1275 = vrot.slane %v1270, %v1274
    %v1277 = vadd.f32 %v1269, %v1275
    %v1278 = vxor.u32 %v1277, 2147483648
    %v1279 = vmul.f32 %v1278, 1.442695
    %v1280 = vpow.pop %v1279
    %v1281 = vadd.f32 %v1280, 1.0
    %v1282 = vrcp.pop %v1281
    %v1283 = vmul.f32 1.0, %v1282
    %vm1284 = vcmask 15360
    %1285 = vst.msk [vmem:[%s13] sm:$0xff] %vm1284, %v1283
    // Predicated region
    $region78: #{attention_model.1} parent=1 // pred_check
      _
    $region79: #{attention_model.1} parent=1 // pred_check_branch
      %1287 = sbr.rel (0) target = $region81
    $region80: #{attention_model.1} parent=1 // pred_region
      _
    $region81: #{attention_model.1} parent=1 // pred_fallthru
      _
    // Predicated region
    $region82: #{attention_model.1} parent=1 // pred_check
      _
    $region83: #{attention_model.1} parent=1 // pred_check_branch
      %1289 = sbr.rel (0) target = $region85
    $region84: #{attention_model.1} parent=1 // pred_region
      _
    $region85: #{attention_model.1} parent=1 // pred_fallthru
      _
    %1290 = vsyncpa [#allocation3], 1
    %1291 = vsyncpa [#allocation5], 1
    %1292 = vsyncpa [#allocation8], 1
    %1293 = vsyncpa [#allocation11], 1

</llo_original>
